<compile_context>
chip_gen: v7x
topology: tpu7x:2x2x1
jax: 0.10.0
libtpu: 0.0.40
codegen_flags: <defaults>
</compile_context>

<pallas_src>
import functools

import jax
import jax.numpy as jnp
from jax import lax
from jax.experimental import pallas as pl
from jax.experimental.pallas import tpu as pltpu

EPS = 1e-5  # BatchNorm2d default eps


# ----------------------------------------------------------------------------------
# In-kernel helpers
# ----------------------------------------------------------------------------------
def _im2col_conv3x3(x, mask_ref, col_ref, w_ref, b_ref, *, W):
    """3x3 'same' conv in lane-dense layout.

    x:        (Cin, M) f32 value, M = H*W flattened spatial (lane axis)
    mask_ref: (9, M) f32 VMEM ref of 0/1 border-validity rows (tap-major)
    col_ref:  (9*Cin, M) f32 VMEM scratch (im2col matrix)
    w_ref:    (Cout, 9*Cin) bf16 VMEM ref (rows: tap-major, channel-minor)
    b_ref:    (Cout, 1) f32 VMEM ref
    returns   (Cout, M) f32 pre-BN conv output.
    """
    C, M = x.shape
    t = 0
    for dy in (-1, 0, 1):
        for dx in (-1, 0, 1):
            d = dy * W + dx
            if d == 0:
                tap = x
            else:
                # shifted[m] = x[m + d]: cyclic lane rotation on the XLU slot; the
                # wrap-around / out-of-image positions are zeroed by the 0/1 mask row.
                tap = pltpu.roll(x, shift=(-d) % M, axis=1) * mask_ref[t:t + 1, :]
            col_ref[t * C:(t + 1) * C, :] = tap
            t += 1
    col = col_ref[...].astype(jnp.bfloat16)                    # bf16 MXU inputs
    y = jnp.dot(w_ref[...], col, preferred_element_type=jnp.float32)  # (Cout, M) f32
    return y + b_ref[...]


def _emit_stats(sum_ref, ssq_ref, y):
    """Per-image per-channel sum / sum-of-squares (reduced over N in the wrapper)."""
    sum_ref[0] = jnp.sum(y, axis=1, keepdims=True)
    ssq_ref[0] = jnp.sum(y * y, axis=1, keepdims=True)


# ----------------------------------------------------------------------------------
# Kernels
# ----------------------------------------------------------------------------------
def conv_stats_kernel(x_ref, w_ref, b_ref, mask_ref, y_ref, sum_ref, ssq_ref,
                      col_ref, *, W):
    """Stage 1: conv1 on the raw input; emit pre-BN output + per-image statistics."""
    y = _im2col_conv3x3(x_ref[0], mask_ref, col_ref, w_ref, b_ref, W=W)
    y_ref[0] = y
    _emit_stats(sum_ref, ssq_ref, y)


def bnrelu_conv_stats_kernel(y1_ref, sc_ref, sh_ref, w_ref, b_ref, mask_ref,
                             y_ref, sum_ref, ssq_ref, col_ref, *, W):
    """Stage 2: BN1(batch stats) + ReLU, then conv2; emit pre-BN output + stats."""
    a = jnp.maximum(y1_ref[0] * sc_ref[...] + sh_ref[...], 0.0)   # f32 BN+ReLU
    y = _im2col_conv3x3(a, mask_ref, col_ref, w_ref, b_ref, W=W)
    y_ref[0] = y
    _emit_stats(sum_ref, ssq_ref, y)


def bnrelu_pool_kernel(y2_ref, sc_ref, sh_ref, sel_ref, feat_ref, pool_ref, *, W):
    """Stage 3: BN2 + ReLU -> features; 2x2/2 max-pool -> pooled output."""
    a = jnp.maximum(y2_ref[0] * sc_ref[...] + sh_ref[...], 0.0)   # (Cout, M) f32
    feat_ref[0] = a
    M = a.shape[-1]
    # pair-max along W (lane shift -1), then along H (lane shift -W)
    r = jnp.maximum(a, pltpu.roll(a, shift=M - 1, axis=1))
    r = jnp.maximum(r, pltpu.roll(r, shift=M - W, axis=1))
    # r[:, 2i*W + 2j] now holds the 2x2 window max; compact those columns with the
    # precomputed one-hot selection matmul (exact: one 1.0 per output column), which
    # keeps the pooled store lane-dense (no strided slices / per-column loop).
    pool_ref[0] = jnp.dot(r, sel_ref[...], preferred_element_type=jnp.float32)


# ----------------------------------------------------------------------------------
# Wrapper
# ----------------------------------------------------------------------------------
def _bn_scale_shift(sum_, ssq, gamma, beta, count):
    """Fold training-mode BN (biased batch var) into a per-channel scale/shift."""
    mean = sum_[:, 0] / count
    var = jnp.maximum(ssq[:, 0] / count - mean * mean, 0.0)
    scale = gamma * lax.rsqrt(var + EPS)
    shift = beta - mean * scale
    return scale[:, None], shift[:, None]


@jax.jit
def encoder_block(x_nchw, params):
    """x_nchw: (N, Cin, H, W) f32 -> (features (N,Cout,H,W), pooled (N,Cout,H/2,W/2))."""
    N, Cin, H, W = x_nchw.shape
    Cout = params["w1"].shape[-1]
    assert H % 2 == 0 and W % 2 == 0
    M = H * W
    P = (H // 2) * (W // 2)
    count = jnp.float32(N * M)

    # Free reshape: NCHW -> (N, C, H*W); keeps the big spatial extent on lanes.
    x2d = x_nchw.reshape(N, Cin, M)

    # Conv weights as a single (Cout, 9*Cin) im2col matrix (tap-major, channel-minor),
    # cast to bf16 for the MXU; biases / BN params stay f32.
    w1 = params["w1"].reshape(9 * Cin, Cout).T.astype(jnp.bfloat16)
    w2 = params["w2"].reshape(9 * Cout, Cout).T.astype(jnp.bfloat16)
    b1 = params["b1"].reshape(Cout, 1).astype(jnp.float32)
    b2 = params["b2"].reshape(Cout, 1).astype(jnp.float32)
    g1, be1 = params["g1"].reshape(Cout), params["be1"].reshape(Cout)
    g2, be2 = params["g2"].reshape(Cout), params["be2"].reshape(Cout)

    # Host-side constants (DMA'd once: constant index_map, so the block never changes):
    #   * 0/1 border-validity masks for the 9 conv taps  -> no per-image iota/compare.
    #   * one-hot 2x2-pool column-selection matrix       -> exact, MXU-friendly gather.
    pos = jnp.arange(M, dtype=jnp.int32)
    hh, ww = pos // W, pos % W
    mask = jnp.stack(
        [((hh + dy >= 0) & (hh + dy < H) & (ww + dx >= 0) & (ww + dx < W))
         for dy in (-1, 0, 1) for dx in (-1, 0, 1)],
        axis=0).astype(jnp.float32)                                    # (9, M)
    p_ids = jnp.arange(P, dtype=jnp.int32)
    src = 2 * (p_ids // (W // 2)) * W + 2 * (p_ids % (W // 2))
    sel = (pos[:, None] == src[None, :]).astype(jnp.float32)           # (M, P)

    # 32 MiB scoped VMEM is safe on every generation (v7x has 64 MiB physical);
    # all three stages are batch-parallel (no cross-image state in-kernel).
    cp = pltpu.CompilerParams(dimension_semantics=("parallel",),
                              vmem_limit_bytes=32 * 1024 * 1024)

    img = lambda C_, L: pl.BlockSpec((1, C_, L), lambda n: (n, 0, 0))
    full2d = lambda shape: pl.BlockSpec(shape, lambda n: (0, 0))
    stat_spec = pl.BlockSpec((1, Cout, 1), lambda n: (n, 0, 0))
    stat_shape = jax.ShapeDtypeStruct((N, Cout, 1), jnp.float32)

    # --- stage 1: conv1 + per-image batch-statistic emission ----------------------
    y1, s1, q1 = pl.pallas_call(
        functools.partial(conv_stats_kernel, W=W),
        grid=(N,),
        in_specs=[img(Cin, M), full2d((Cout, 9 * Cin)), full2d((Cout, 1)),
                  full2d((9, M))],
        out_specs=(img(Cout, M), stat_spec, stat_spec),
        out_shape=(jax.ShapeDtypeStruct((N, Cout, M), jnp.float32),
                   stat_shape, stat_shape),
        scratch_shapes=[pltpu.VMEM((9 * Cin, M), jnp.float32)],
        compiler_params=cp,
    )(x2d, w1, b1, mask)
    sc1, sh1 = _bn_scale_shift(jnp.sum(s1, axis=0), jnp.sum(q1, axis=0),
                               g1, be1, count)

    # --- stage 2: BN1 + ReLU + conv2 + per-image batch-statistic emission ---------
    y2, s2, q2 = pl.pallas_call(
        functools.partial(bnrelu_conv_stats_kernel, W=W),
        grid=(N,),
        in_specs=[img(Cout, M), full2d((Cout, 1)), full2d((Cout, 1)),
                  full2d((Cout, 9 * Cout)), full2d((Cout, 1)), full2d((9, M))],
        out_specs=(img(Cout, M), stat_spec, stat_spec),
        out_shape=(jax.ShapeDtypeStruct((N, Cout, M), jnp.float32),
                   stat_shape, stat_shape),
        scratch_shapes=[pltpu.VMEM((9 * Cout, M), jnp.float32)],
        compiler_params=cp,
    )(y1, sc1, sh1, w2, b2, mask)
    sc2, sh2 = _bn_scale_shift(jnp.sum(s2, axis=0), jnp.sum(q2, axis=0),
                               g2, be2, count)

    # --- stage 3: BN2 + ReLU -> features; 2x2 max-pool -> pooled ------------------
    feat2d, pool2d = pl.pallas_call(
        functools.partial(bnrelu_pool_kernel, W=W),
        grid=(N,),
        in_specs=[img(Cout, M), full2d((Cout, 1)), full2d((Cout, 1)),
                  full2d((M, P))],
        out_specs=(img(Cout, M), img(Cout, P)),
        out_shape=(jax.ShapeDtypeStruct((N, Cout, M), jnp.float32),
                   jax.ShapeDtypeStruct((N, Cout, P), jnp.float32)),
        compiler_params=cp,
    )(y2, sc2, sh2, sel)

    # Free reshapes back to NCHW.
    return (feat2d.reshape(N, Cout, H, W),
            pool2d.reshape(N, Cout, H // 2, W // 2))


# ----------------------------------------------------------------------------------
# Params / reference
# ----------------------------------------------------------------------------------
def init_params(key, in_channels, out_channels, k=3):
    """Deterministic init mirroring PyTorch defaults (conv: U(+/-1/sqrt(fan_in));
    BatchNorm: weight=1, bias=0). Conv weights stored HWIO (kh, kw, Cin, Cout)."""
    k1, k2, k3, k4 = jax.random.split(key, 4)
    bound1 = 1.0 / (in_channels * k * k) ** 0.5
    bound2 = 1.0 / (out_channels * k * k) ** 0.5
    return {
        "w1": jax.random.uniform(k1, (k, k, in_channels, out_channels),
                                 jnp.float32, -bound1, bound1),
        "b1": jax.random.uniform(k2, (1, out_channels), jnp.float32, -bound1, bound1),
        "g1": jnp.ones((1, out_channels), jnp.float32),
        "be1": jnp.zeros((1, out_channels), jnp.float32),
        "w2": jax.random.uniform(k3, (k, k, out_channels, out_channels),
                                 jnp.float32, -bound2, bound2),
        "b2": jax.random.uniform(k4, (1, out_channels), jnp.float32, -bound2, bound2),
        "g2": jnp.ones((1, out_channels), jnp.float32),
        "be2": jnp.zeros((1, out_channels), jnp.float32),
    }


def _reference(x, params):
    """Pure-JAX (XLA) forward, f32 throughout, for a loose numerical cross-check."""
    dn = ("NCHW", "HWIO", "NCHW")

    def block(h, w, b, g, be):
        y = lax.conv_general_dilated(h, w, (1, 1), "SAME", dimension_numbers=dn)
        y = y + b.reshape(1, -1, 1, 1)
        mean = jnp.mean(y, axis=(0, 2, 3), keepdims=True)
        var = jnp.mean((y - mean) ** 2, axis=(0, 2, 3), keepdims=True)
        y = (y - mean) * lax.rsqrt(var + EPS) * g.reshape(1, -1, 1, 1) + be.reshape(1, -1, 1, 1)
        return jnp.maximum(y, 0.0)

    h = block(x, params["w1"], params["b1"], params["g1"], params["be1"])
    h = block(h, params["w2"], params["b2"], params["g2"], params["be2"])
    N, C, H, W = h.shape
    p = jnp.max(h.reshape(N, C, H // 2, 2, W // 2, 2), axis=(3, 5))
    return h, p


if __name__ == "__main__":
    N, Cin, Cout, H, W = 2, 4, 8, 16, 16
    key = jax.random.PRNGKey(0)
    kx, kp = jax.random.split(key)
    x = jax.random.normal(kx, (N, Cin, H, W), jnp.float32)
    params = init_params(kp, Cin, Cout)

    feat, pooled = encoder_block(x, params)
    jax.block_until_ready((feat, pooled))

    assert feat.shape == (N, Cout, H, W)
    assert pooled.shape == (N, Cout, H // 2, W // 2)
    assert bool(jnp.all(jnp.isfinite(feat))) and bool(jnp.all(jnp.isfinite(pooled)))

    # pooled must be the 2x2 max of the features produced by the same kernel
    self_pool = jnp.max(feat.reshape(N, Cout, H // 2, 2, W // 2, 2), axis=(3, 5))
    assert bool(jnp.allclose(pooled, self_pool, atol=1e-3, rtol=1e-3))

    # loose cross-check vs an f32 XLA reference (bf16 MXU inputs => small deviation)
    ref_feat, ref_pool = _reference(x, params)
    assert bool(jnp.allclose(feat, ref_feat, atol=0.1, rtol=0.1))
    assert bool(jnp.allclose(pooled, ref_pool, atol=0.1, rtol=0.1))

    print("KERNEL_OK")
</pallas_src>

<mosaic_0001>
module attributes {stable_mosaic.version = 11 : i64} {
  func.func @conv_stats_kernel(%arg0: i32, %arg1: memref<1x4x256xf32, #tpu.memory_space<vmem>>, %arg2: memref<8x36xbf16, #tpu.memory_space<vmem>>, %arg3: memref<8x1xf32, #tpu.memory_space<vmem>>, %arg4: memref<9x256xf32, #tpu.memory_space<vmem>>, %arg5: memref<1x8x256xf32, #tpu.memory_space<vmem>>, %arg6: memref<1x8x1xf32, #tpu.memory_space<vmem>>, %arg7: memref<1x8x1xf32, #tpu.memory_space<vmem>>, %arg8: memref<36x256xf32, #tpu.memory_space<vmem>>) attributes {dimension_semantics = [#tpu.dimension_semantics<parallel>], iteration_bounds = array<i64: 2>, scalar_prefetch = 0 : i64, scratch_operands = 1 : i64, tpu.core_type = #tpu.core_type<tc>, window_params = [{transform_indices = @transform_0, window_bounds = array<i64: 1, 4, 256>}, {pipeline_mode = #tpu.pipeline_mode<synchronous>, transform_indices = @transform_1, window_bounds = array<i64: 8, 36>}, {pipeline_mode = #tpu.pipeline_mode<synchronous>, transform_indices = @transform_2, window_bounds = array<i64: 8, 1>}, {pipeline_mode = #tpu.pipeline_mode<synchronous>, transform_indices = @transform_3, window_bounds = array<i64: 9, 256>}, {transform_indices = @transform_4, window_bounds = array<i64: 1, 8, 256>}, {transform_indices = @transform_5, window_bounds = array<i64: 1, 8, 1>}, {transform_indices = @transform_6, window_bounds = array<i64: 1, 8, 1>}]} {
    %c0 = arith.constant 0 : index
    %c0_0 = arith.constant 0 : index
    %c0_1 = arith.constant 0 : index
    %0 = vector.load %arg1[%c0, %c0_0, %c0_1] : memref<1x4x256xf32, #tpu.memory_space<vmem>>, vector<1x4x256xf32>
    %1 = vector.shape_cast %0 : vector<1x4x256xf32> to vector<4x256xf32>
    %c17_i32 = arith.constant 17 : i32
    %2 = tpu.dynamic_rotate %1 by %c17_i32 dim 1 : vector<4x256xf32>, i32 -> vector<4x256xf32>
    %c0_2 = arith.constant 0 : index
    %c0_3 = arith.constant 0 : index
    %3 = vector.load %arg4[%c0_2, %c0_3] : memref<9x256xf32, #tpu.memory_space<vmem>>, vector<1x256xf32>
    %4 = vector.broadcast %3 : vector<1x256xf32> to vector<4x256xf32>
    %5 = arith.mulf %2, %4 : vector<4x256xf32>
    %c0_4 = arith.constant 0 : index
    %c0_5 = arith.constant 0 : index
    %6 = vector.load %arg8[%c0_4, %c0_5] : memref<36x256xf32, #tpu.memory_space<vmem>>, vector<4x256xf32>
    tpu.vector_store %arg8[%c0_4, %c0_5], %5 {strides = array<i32>} : memref<36x256xf32, #tpu.memory_space<vmem>>, vector<4x256xf32>,
    %c16_i32 = arith.constant 16 : i32
    %7 = tpu.dynamic_rotate %1 by %c16_i32 dim 1 : vector<4x256xf32>, i32 -> vector<4x256xf32>
    %c1 = arith.constant 1 : index
    %c0_6 = arith.constant 0 : index
    %8 = vector.load %arg4[%c1, %c0_6] : memref<9x256xf32, #tpu.memory_space<vmem>>, vector<1x256xf32>
    %9 = vector.broadcast %8 : vector<1x256xf32> to vector<4x256xf32>
    %10 = arith.mulf %7, %9 : vector<4x256xf32>
    %c4 = arith.constant 4 : index
    %c0_7 = arith.constant 0 : index
    %11 = vector.load %arg8[%c4, %c0_7] : memref<36x256xf32, #tpu.memory_space<vmem>>, vector<4x256xf32>
    tpu.vector_store %arg8[%c4, %c0_7], %10 {strides = array<i32>} : memref<36x256xf32, #tpu.memory_space<vmem>>, vector<4x256xf32>,
    %c15_i32 = arith.constant 15 : i32
    %12 = tpu.dynamic_rotate %1 by %c15_i32 dim 1 : vector<4x256xf32>, i32 -> vector<4x256xf32>
    %c2 = arith.constant 2 : index
    %c0_8 = arith.constant 0 : index
    %13 = vector.load %arg4[%c2, %c0_8] : memref<9x256xf32, #tpu.memory_space<vmem>>, vector<1x256xf32>
    %14 = vector.broadcast %13 : vector<1x256xf32> to vector<4x256xf32>
    %15 = arith.mulf %12, %14 : vector<4x256xf32>
    %c8 = arith.constant 8 : index
    %c0_9 = arith.constant 0 : index
    %16 = vector.load %arg8[%c8, %c0_9] : memref<36x256xf32, #tpu.memory_space<vmem>>, vector<4x256xf32>
    tpu.vector_store %arg8[%c8, %c0_9], %15 {strides = array<i32>} : memref<36x256xf32, #tpu.memory_space<vmem>>, vector<4x256xf32>,
    %c1_i32 = arith.constant 1 : i32
    %17 = tpu.dynamic_rotate %1 by %c1_i32 dim 1 : vector<4x256xf32>, i32 -> vector<4x256xf32>
    %c3 = arith.constant 3 : index
    %c0_10 = arith.constant 0 : index
    %18 = vector.load %arg4[%c3, %c0_10] : memref<9x256xf32, #tpu.memory_space<vmem>>, vector<1x256xf32>
    %19 = vector.broadcast %18 : vector<1x256xf32> to vector<4x256xf32>
    %20 = arith.mulf %17, %19 : vector<4x256xf32>
    %c12 = arith.constant 12 : index
    %c0_11 = arith.constant 0 : index
    %21 = vector.load %arg8[%c12, %c0_11] : memref<36x256xf32, #tpu.memory_space<vmem>>, vector<4x256xf32>
    tpu.vector_store %arg8[%c12, %c0_11], %20 {strides = array<i32>} : memref<36x256xf32, #tpu.memory_space<vmem>>, vector<4x256xf32>,
    %c16 = arith.constant 16 : index
    %c0_12 = arith.constant 0 : index
    %22 = vector.load %arg8[%c16, %c0_12] : memref<36x256xf32, #tpu.memory_space<vmem>>, vector<4x256xf32>
    tpu.vector_store %arg8[%c16, %c0_12], %1 {strides = array<i32>} : memref<36x256xf32, #tpu.memory_space<vmem>>, vector<4x256xf32>,
    %c255_i32 = arith.constant 255 : i32
    %23 = tpu.dynamic_rotate %1 by %c255_i32 dim 1 : vector<4x256xf32>, i32 -> vector<4x256xf32>
    %c5 = arith.constant 5 : index
    %c0_13 = arith.constant 0 : index
    %24 = vector.load %arg4[%c5, %c0_13] : memref<9x256xf32, #tpu.memory_space<vmem>>, vector<1x256xf32>
    %25 = vector.broadcast %24 : vector<1x256xf32> to vector<4x256xf32>
    %26 = arith.mulf %23, %25 : vector<4x256xf32>
    %c20 = arith.constant 20 : index
    %c0_14 = arith.constant 0 : index
    %27 = vector.load %arg8[%c20, %c0_14] : memref<36x256xf32, #tpu.memory_space<vmem>>, vector<4x256xf32>
    tpu.vector_store %arg8[%c20, %c0_14], %26 {strides = array<i32>} : memref<36x256xf32, #tpu.memory_space<vmem>>, vector<4x256xf32>,
    %c241_i32 = arith.constant 241 : i32
    %28 = tpu.dynamic_rotate %1 by %c241_i32 dim 1 : vector<4x256xf32>, i32 -> vector<4x256xf32>
    %c6 = arith.constant 6 : index
    %c0_15 = arith.constant 0 : index
    %29 = vector.load %arg4[%c6, %c0_15] : memref<9x256xf32, #tpu.memory_space<vmem>>, vector<1x256xf32>
    %30 = vector.broadcast %29 : vector<1x256xf32> to vector<4x256xf32>
    %31 = arith.mulf %28, %30 : vector<4x256xf32>
    %c24 = arith.constant 24 : index
    %c0_16 = arith.constant 0 : index
    %32 = vector.load %arg8[%c24, %c0_16] : memref<36x256xf32, #tpu.memory_space<vmem>>, vector<4x256xf32>
    tpu.vector_store %arg8[%c24, %c0_16], %31 {strides = array<i32>} : memref<36x256xf32, #tpu.memory_space<vmem>>, vector<4x256xf32>,
    %c240_i32 = arith.constant 240 : i32
    %33 = tpu.dynamic_rotate %1 by %c240_i32 dim 1 : vector<4x256xf32>, i32 -> vector<4x256xf32>
    %c7 = arith.constant 7 : index
    %c0_17 = arith.constant 0 : index
    %34 = vector.load %arg4[%c7, %c0_17] : memref<9x256xf32, #tpu.memory_space<vmem>>, vector<1x256xf32>
    %35 = vector.broadcast %34 : vector<1x256xf32> to vector<4x256xf32>
    %36 = arith.mulf %33, %35 : vector<4x256xf32>
    %c28 = arith.constant 28 : index
    %c0_18 = arith.constant 0 : index
    %37 = vector.load %arg8[%c28, %c0_18] : memref<36x256xf32, #tpu.memory_space<vmem>>, vector<4x256xf32>
    tpu.vector_store %arg8[%c28, %c0_18], %36 {strides = array<i32>} : memref<36x256xf32, #tpu.memory_space<vmem>>, vector<4x256xf32>,
    %c239_i32 = arith.constant 239 : i32
    %38 = tpu.dynamic_rotate %1 by %c239_i32 dim 1 : vector<4x256xf32>, i32 -> vector<4x256xf32>
    %c8_19 = arith.constant 8 : index
    %c0_20 = arith.constant 0 : index
    %39 = vector.load %arg4[%c8_19, %c0_20] : memref<9x256xf32, #tpu.memory_space<vmem>>, vector<1x256xf32>
    %40 = vector.broadcast %39 : vector<1x256xf32> to vector<4x256xf32>
    %41 = arith.mulf %38, %40 : vector<4x256xf32>
    %c32 = arith.constant 32 : index
    %c0_21 = arith.constant 0 : index
    %42 = vector.load %arg8[%c32, %c0_21] : memref<36x256xf32, #tpu.memory_space<vmem>>, vector<4x256xf32>
    tpu.vector_store %arg8[%c32, %c0_21], %41 {strides = array<i32>} : memref<36x256xf32, #tpu.memory_space<vmem>>, vector<4x256xf32>,
    %c0_22 = arith.constant 0 : index
    %c0_23 = arith.constant 0 : index
    %43 = vector.load %arg8[%c0_22, %c0_23] : memref<36x256xf32, #tpu.memory_space<vmem>>, vector<36x256xf32>
    %44 = arith.truncf %43 : vector<36x256xf32> to vector<36x256xbf16>
    %c0_24 = arith.constant 0 : index
    %c0_25 = arith.constant 0 : index
    %45 = vector.load %arg2[%c0_24, %c0_25] : memref<8x36xbf16, #tpu.memory_space<vmem>>, vector<8x36xbf16>
    %cst = arith.constant dense<0.000000e+00> : vector<8x256xf32>
    %46 = tpu.matmul %45, %44, %cst {dimension_numbers = #tpu.dot_dimension_numbers<[1], [0], [0], [1], [0, 0, 1, 1], [], []>} : vector<8x36xbf16>, vector<36x256xbf16>, vector<8x256xf32> -> vector<8x256xf32>
    %c0_26 = arith.constant 0 : index
    %c0_27 = arith.constant 0 : index
    %47 = vector.load %arg3[%c0_26, %c0_27] : memref<8x1xf32, #tpu.memory_space<vmem>>, vector<8x1xf32>
    %48 = vector.broadcast %47 : vector<8x1xf32> to vector<8x256xf32>
    %49 = arith.addf %46, %48 : vector<8x256xf32>
    %c0_28 = arith.constant 0 : index
    %c0_29 = arith.constant 0 : index
    %c0_30 = arith.constant 0 : index
    %50 = vector.load %arg5[%c0_28, %c0_29, %c0_30] : memref<1x8x256xf32, #tpu.memory_space<vmem>>, vector<1x8x256xf32>
    %51 = vector.shape_cast %50 : vector<1x8x256xf32> to vector<8x256xf32>
    %52 = vector.shape_cast %49 : vector<8x256xf32> to vector<1x8x256xf32>
    tpu.vector_store %arg5[%c0_28, %c0_29, %c0_30], %52 {strides = array<i32>} : memref<1x8x256xf32, #tpu.memory_space<vmem>>, vector<1x8x256xf32>,
    %cst_31 = arith.constant dense<0.000000e+00> : vector<8xf32>
    %53 = vector.multi_reduction <add>, %49, %cst_31 [1] : vector<8x256xf32> to vector<8xf32>
    %54 = vector.shape_cast %53 : vector<8xf32> to vector<8x1xf32>
    %c0_32 = arith.constant 0 : index
    %c0_33 = arith.constant 0 : index
    %c0_34 = arith.constant 0 : index
    %55 = vector.load %arg6[%c0_32, %c0_33, %c0_34] : memref<1x8x1xf32, #tpu.memory_space<vmem>>, vector<1x8x1xf32>
    %56 = vector.shape_cast %55 : vector<1x8x1xf32> to vector<8x1xf32>
    %57 = vector.shape_cast %54 : vector<8x1xf32> to vector<1x8x1xf32>
    tpu.vector_store %arg6[%c0_32, %c0_33, %c0_34], %57 {strides = array<i32>} : memref<1x8x1xf32, #tpu.memory_space<vmem>>, vector<1x8x1xf32>,
    %58 = arith.mulf %49, %49 : vector<8x256xf32>
    %cst_35 = arith.constant dense<0.000000e+00> : vector<8xf32>
    %59 = vector.multi_reduction <add>, %58, %cst_35 [1] : vector<8x256xf32> to vector<8xf32>
    %60 = vector.shape_cast %59 : vector<8xf32> to vector<8x1xf32>
    %c0_36 = arith.constant 0 : index
    %c0_37 = arith.constant 0 : index
    %c0_38 = arith.constant 0 : index
    %61 = vector.load %arg7[%c0_36, %c0_37, %c0_38] : memref<1x8x1xf32, #tpu.memory_space<vmem>>, vector<1x8x1xf32>
    %62 = vector.shape_cast %61 : vector<1x8x1xf32> to vector<8x1xf32>
    %63 = vector.shape_cast %60 : vector<8x1xf32> to vector<1x8x1xf32>
    tpu.vector_store %arg7[%c0_36, %c0_37, %c0_38], %63 {strides = array<i32>} : memref<1x8x1xf32, #tpu.memory_space<vmem>>, vector<1x8x1xf32>,
    return
  }
  func.func @transform_0(%arg0: i32) -> (i32, i32, i32) {
    %c0_i32 = arith.constant 0 : i32
    %c0_i32_0 = arith.constant 0 : i32
    %c0_i32_1 = arith.constant 0 : i32
    return %arg0, %c0_i32, %c0_i32_0 : i32, i32, i32
  }
  func.func @transform_1(%arg0: i32) -> (i32, i32) {
    %c0_i32 = arith.constant 0 : i32
    %c0_i32_0 = arith.constant 0 : i32
    %c0_i32_1 = arith.constant 0 : i32
    return %c0_i32, %c0_i32_0 : i32, i32
  }
  func.func @transform_2(%arg0: i32) -> (i32, i32) {
    %c0_i32 = arith.constant 0 : i32
    %c0_i32_0 = arith.constant 0 : i32
    %c0_i32_1 = arith.constant 0 : i32
    return %c0_i32, %c0_i32_0 : i32, i32
  }
  func.func @transform_3(%arg0: i32) -> (i32, i32) {
    %c0_i32 = arith.constant 0 : i32
    %c0_i32_0 = arith.constant 0 : i32
    %c0_i32_1 = arith.constant 0 : i32
    return %c0_i32, %c0_i32_0 : i32, i32
  }
  func.func @transform_4(%arg0: i32) -> (i32, i32, i32) {
    %c0_i32 = arith.constant 0 : i32
    %c0_i32_0 = arith.constant 0 : i32
    %c0_i32_1 = arith.constant 0 : i32
    return %arg0, %c0_i32, %c0_i32_0 : i32, i32, i32
  }
  func.func @transform_5(%arg0: i32) -> (i32, i32, i32) {
    %c0_i32 = arith.constant 0 : i32
    %c0_i32_0 = arith.constant 0 : i32
    %c0_i32_1 = arith.constant 0 : i32
    return %arg0, %c0_i32, %c0_i32_0 : i32, i32, i32
  }
  func.func @transform_6(%arg0: i32) -> (i32, i32, i32) {
    %c0_i32 = arith.constant 0 : i32
    %c0_i32_0 = arith.constant 0 : i32
    %c0_i32_1 = arith.constant 0 : i32
    return %arg0, %c0_i32, %c0_i32_0 : i32, i32, i32
  }
}

module attributes {stable_mosaic.version = 11 : i64} {
  func.func @bnrelu_conv_stats_kernel(%arg0: i32, %arg1: memref<1x8x256xf32, #tpu.memory_space<vmem>>, %arg2: memref<8x1xf32, #tpu.memory_space<vmem>>, %arg3: memref<8x1xf32, #tpu.memory_space<vmem>>, %arg4: memref<8x72xbf16, #tpu.memory_space<vmem>>, %arg5: memref<8x1xf32, #tpu.memory_space<vmem>>, %arg6: memref<9x256xf32, #tpu.memory_space<vmem>>, %arg7: memref<1x8x256xf32, #tpu.memory_space<vmem>>, %arg8: memref<1x8x1xf32, #tpu.memory_space<vmem>>, %arg9: memref<1x8x1xf32, #tpu.memory_space<vmem>>, %arg10: memref<72x256xf32, #tpu.memory_space<vmem>>) attributes {dimension_semantics = [#tpu.dimension_semantics<parallel>], iteration_bounds = array<i64: 2>, scalar_prefetch = 0 : i64, scratch_operands = 1 : i64, tpu.core_type = #tpu.core_type<tc>, window_params = [{transform_indices = @transform_0, window_bounds = array<i64: 1, 8, 256>}, {pipeline_mode = #tpu.pipeline_mode<synchronous>, transform_indices = @transform_1, window_bounds = array<i64: 8, 1>}, {pipeline_mode = #tpu.pipeline_mode<synchronous>, transform_indices = @transform_2, window_bounds = array<i64: 8, 1>}, {pipeline_mode = #tpu.pipeline_mode<synchronous>, transform_indices = @transform_3, window_bounds = array<i64: 8, 72>}, {pipeline_mode = #tpu.pipeline_mode<synchronous>, transform_indices = @transform_4, window_bounds = array<i64: 8, 1>}, {pipeline_mode = #tpu.pipeline_mode<synchronous>, transform_indices = @transform_5, window_bounds = array<i64: 9, 256>}, {transform_indices = @transform_6, window_bounds = array<i64: 1, 8, 256>}, {transform_indices = @transform_7, window_bounds = array<i64: 1, 8, 1>}, {transform_indices = @transform_8, window_bounds = array<i64: 1, 8, 1>}]} {
    %c0 = arith.constant 0 : index
    %c0_0 = arith.constant 0 : index
    %c0_1 = arith.constant 0 : index
    %0 = vector.load %arg1[%c0, %c0_0, %c0_1] : memref<1x8x256xf32, #tpu.memory_space<vmem>>, vector<1x8x256xf32>
    %1 = vector.shape_cast %0 : vector<1x8x256xf32> to vector<8x256xf32>
    %c0_2 = arith.constant 0 : index
    %c0_3 = arith.constant 0 : index
    %2 = vector.load %arg2[%c0_2, %c0_3] : memref<8x1xf32, #tpu.memory_space<vmem>>, vector<8x1xf32>
    %3 = vector.broadcast %2 : vector<8x1xf32> to vector<8x256xf32>
    %4 = arith.mulf %1, %3 : vector<8x256xf32>
    %c0_4 = arith.constant 0 : index
    %c0_5 = arith.constant 0 : index
    %5 = vector.load %arg3[%c0_4, %c0_5] : memref<8x1xf32, #tpu.memory_space<vmem>>, vector<8x1xf32>
    %6 = vector.broadcast %5 : vector<8x1xf32> to vector<8x256xf32>
    %7 = arith.addf %4, %6 : vector<8x256xf32>
    %cst = arith.constant 0.000000e+00 : f32
    %8 = vector.broadcast %cst : f32 to vector<8x256xf32>
    %9 = arith.maximumf %7, %8 : vector<8x256xf32>
    %c17_i32 = arith.constant 17 : i32
    %10 = tpu.dynamic_rotate %9 by %c17_i32 dim 1 : vector<8x256xf32>, i32 -> vector<8x256xf32>
    %c0_6 = arith.constant 0 : index
    %c0_7 = arith.constant 0 : index
    %11 = vector.load %arg6[%c0_6, %c0_7] : memref<9x256xf32, #tpu.memory_space<vmem>>, vector<1x256xf32>
    %12 = vector.broadcast %11 : vector<1x256xf32> to vector<8x256xf32>
    %13 = arith.mulf %10, %12 : vector<8x256xf32>
    %c0_8 = arith.constant 0 : index
    %c0_9 = arith.constant 0 : index
    %14 = vector.load %arg10[%c0_8, %c0_9] : memref<72x256xf32, #tpu.memory_space<vmem>>, vector<8x256xf32>
    tpu.vector_store %arg10[%c0_8, %c0_9], %13 {strides = array<i32>} : memref<72x256xf32, #tpu.memory_space<vmem>>, vector<8x256xf32>,
    %c16_i32 = arith.constant 16 : i32
    %15 = tpu.dynamic_rotate %9 by %c16_i32 dim 1 : vector<8x256xf32>, i32 -> vector<8x256xf32>
    %c1 = arith.constant 1 : index
    %c0_10 = arith.constant 0 : index
    %16 = vector.load %arg6[%c1, %c0_10] : memref<9x256xf32, #tpu.memory_space<vmem>>, vector<1x256xf32>
    %17 = vector.broadcast %16 : vector<1x256xf32> to vector<8x256xf32>
    %18 = arith.mulf %15, %17 : vector<8x256xf32>
    %c8 = arith.constant 8 : index
    %c0_11 = arith.constant 0 : index
    %19 = vector.load %arg10[%c8, %c0_11] : memref<72x256xf32, #tpu.memory_space<vmem>>, vector<8x256xf32>
    tpu.vector_store %arg10[%c8, %c0_11], %18 {strides = array<i32>} : memref<72x256xf32, #tpu.memory_space<vmem>>, vector<8x256xf32>,
    %c15_i32 = arith.constant 15 : i32
    %20 = tpu.dynamic_rotate %9 by %c15_i32 dim 1 : vector<8x256xf32>, i32 -> vector<8x256xf32>
    %c2 = arith.constant 2 : index
    %c0_12 = arith.constant 0 : index
    %21 = vector.load %arg6[%c2, %c0_12] : memref<9x256xf32, #tpu.memory_space<vmem>>, vector<1x256xf32>
    %22 = vector.broadcast %21 : vector<1x256xf32> to vector<8x256xf32>
    %23 = arith.mulf %20, %22 : vector<8x256xf32>
    %c16 = arith.constant 16 : index
    %c0_13 = arith.constant 0 : index
    %24 = vector.load %arg10[%c16, %c0_13] : memref<72x256xf32, #tpu.memory_space<vmem>>, vector<8x256xf32>
    tpu.vector_store %arg10[%c16, %c0_13], %23 {strides = array<i32>} : memref<72x256xf32, #tpu.memory_space<vmem>>, vector<8x256xf32>,
    %c1_i32 = arith.constant 1 : i32
    %25 = tpu.dynamic_rotate %9 by %c1_i32 dim 1 : vector<8x256xf32>, i32 -> vector<8x256xf32>
    %c3 = arith.constant 3 : index
    %c0_14 = arith.constant 0 : index
    %26 = vector.load %arg6[%c3, %c0_14] : memref<9x256xf32, #tpu.memory_space<vmem>>, vector<1x256xf32>
    %27 = vector.broadcast %26 : vector<1x256xf32> to vector<8x256xf32>
    %28 = arith.mulf %25, %27 : vector<8x256xf32>
    %c24 = arith.constant 24 : index
    %c0_15 = arith.constant 0 : index
    %29 = vector.load %arg10[%c24, %c0_15] : memref<72x256xf32, #tpu.memory_space<vmem>>, vector<8x256xf32>
    tpu.vector_store %arg10[%c24, %c0_15], %28 {strides = array<i32>} : memref<72x256xf32, #tpu.memory_space<vmem>>, vector<8x256xf32>,
    %c32 = arith.constant 32 : index
    %c0_16 = arith.constant 0 : index
    %30 = vector.load %arg10[%c32, %c0_16] : memref<72x256xf32, #tpu.memory_space<vmem>>, vector<8x256xf32>
    tpu.vector_store %arg10[%c32, %c0_16], %9 {strides = array<i32>} : memref<72x256xf32, #tpu.memory_space<vmem>>, vector<8x256xf32>,
    %c255_i32 = arith.constant 255 : i32
    %31 = tpu.dynamic_rotate %9 by %c255_i32 dim 1 : vector<8x256xf32>, i32 -> vector<8x256xf32>
    %c5 = arith.constant 5 : index
    %c0_17 = arith.constant 0 : index
    %32 = vector.load %arg6[%c5, %c0_17] : memref<9x256xf32, #tpu.memory_space<vmem>>, vector<1x256xf32>
    %33 = vector.broadcast %32 : vector<1x256xf32> to vector<8x256xf32>
    %34 = arith.mulf %31, %33 : vector<8x256xf32>
    %c40 = arith.constant 40 : index
    %c0_18 = arith.constant 0 : index
    %35 = vector.load %arg10[%c40, %c0_18] : memref<72x256xf32, #tpu.memory_space<vmem>>, vector<8x256xf32>
    tpu.vector_store %arg10[%c40, %c0_18], %34 {strides = array<i32>} : memref<72x256xf32, #tpu.memory_space<vmem>>, vector<8x256xf32>,
    %c241_i32 = arith.constant 241 : i32
    %36 = tpu.dynamic_rotate %9 by %c241_i32 dim 1 : vector<8x256xf32>, i32 -> vector<8x256xf32>
    %c6 = arith.constant 6 : index
    %c0_19 = arith.constant 0 : index
    %37 = vector.load %arg6[%c6, %c0_19] : memref<9x256xf32, #tpu.memory_space<vmem>>, vector<1x256xf32>
    %38 = vector.broadcast %37 : vector<1x256xf32> to vector<8x256xf32>
    %39 = arith.mulf %36, %38 : vector<8x256xf32>
    %c48 = arith.constant 48 : index
    %c0_20 = arith.constant 0 : index
    %40 = vector.load %arg10[%c48, %c0_20] : memref<72x256xf32, #tpu.memory_space<vmem>>, vector<8x256xf32>
    tpu.vector_store %arg10[%c48, %c0_20], %39 {strides = array<i32>} : memref<72x256xf32, #tpu.memory_space<vmem>>, vector<8x256xf32>,
    %c240_i32 = arith.constant 240 : i32
    %41 = tpu.dynamic_rotate %9 by %c240_i32 dim 1 : vector<8x256xf32>, i32 -> vector<8x256xf32>
    %c7 = arith.constant 7 : index
    %c0_21 = arith.constant 0 : index
    %42 = vector.load %arg6[%c7, %c0_21] : memref<9x256xf32, #tpu.memory_space<vmem>>, vector<1x256xf32>
    %43 = vector.broadcast %42 : vector<1x256xf32> to vector<8x256xf32>
    %44 = arith.mulf %41, %43 : vector<8x256xf32>
    %c56 = arith.constant 56 : index
    %c0_22 = arith.constant 0 : index
    %45 = vector.load %arg10[%c56, %c0_22] : memref<72x256xf32, #tpu.memory_space<vmem>>, vector<8x256xf32>
    tpu.vector_store %arg10[%c56, %c0_22], %44 {strides = array<i32>} : memref<72x256xf32, #tpu.memory_space<vmem>>, vector<8x256xf32>,
    %c239_i32 = arith.constant 239 : i32
    %46 = tpu.dynamic_rotate %9 by %c239_i32 dim 1 : vector<8x256xf32>, i32 -> vector<8x256xf32>
    %c8_23 = arith.constant 8 : index
    %c0_24 = arith.constant 0 : index
    %47 = vector.load %arg6[%c8_23, %c0_24] : memref<9x256xf32, #tpu.memory_space<vmem>>, vector<1x256xf32>
    %48 = vector.broadcast %47 : vector<1x256xf32> to vector<8x256xf32>
    %49 = arith.mulf %46, %48 : vector<8x256xf32>
    %c64 = arith.constant 64 : index
    %c0_25 = arith.constant 0 : index
    %50 = vector.load %arg10[%c64, %c0_25] : memref<72x256xf32, #tpu.memory_space<vmem>>, vector<8x256xf32>
    tpu.vector_store %arg10[%c64, %c0_25], %49 {strides = array<i32>} : memref<72x256xf32, #tpu.memory_space<vmem>>, vector<8x256xf32>,
    %c0_26 = arith.constant 0 : index
    %c0_27 = arith.constant 0 : index
    %51 = vector.load %arg10[%c0_26, %c0_27] : memref<72x256xf32, #tpu.memory_space<vmem>>, vector<72x256xf32>
    %52 = arith.truncf %51 : vector<72x256xf32> to vector<72x256xbf16>
    %c0_28 = arith.constant 0 : index
    %c0_29 = arith.constant 0 : index
    %53 = vector.load %arg4[%c0_28, %c0_29] : memref<8x72xbf16, #tpu.memory_space<vmem>>, vector<8x72xbf16>
    %cst_30 = arith.constant dense<0.000000e+00> : vector<8x256xf32>
    %54 = tpu.matmul %53, %52, %cst_30 {dimension_numbers = #tpu.dot_dimension_numbers<[1], [0], [0], [1], [0, 0, 1, 1], [], []>} : vector<8x72xbf16>, vector<72x256xbf16>, vector<8x256xf32> -> vector<8x256xf32>
    %c0_31 = arith.constant 0 : index
    %c0_32 = arith.constant 0 : index
    %55 = vector.load %arg5[%c0_31, %c0_32] : memref<8x1xf32, #tpu.memory_space<vmem>>, vector<8x1xf32>
    %56 = vector.broadcast %55 : vector<8x1xf32> to vector<8x256xf32>
    %57 = arith.addf %54, %56 : vector<8x256xf32>
    %c0_33 = arith.constant 0 : index
    %c0_34 = arith.constant 0 : index
    %c0_35 = arith.constant 0 : index
    %58 = vector.load %arg7[%c0_33, %c0_34, %c0_35] : memref<1x8x256xf32, #tpu.memory_space<vmem>>, vector<1x8x256xf32>
    %59 = vector.shape_cast %58 : vector<1x8x256xf32> to vector<8x256xf32>
    %60 = vector.shape_cast %57 : vector<8x256xf32> to vector<1x8x256xf32>
    tpu.vector_store %arg7[%c0_33, %c0_34, %c0_35], %60 {strides = array<i32>} : memref<1x8x256xf32, #tpu.memory_space<vmem>>, vector<1x8x256xf32>,
    %cst_36 = arith.constant dense<0.000000e+00> : vector<8xf32>
    %61 = vector.multi_reduction <add>, %57, %cst_36 [1] : vector<8x256xf32> to vector<8xf32>
    %62 = vector.shape_cast %61 : vector<8xf32> to vector<8x1xf32>
    %c0_37 = arith.constant 0 : index
    %c0_38 = arith.constant 0 : index
    %c0_39 = arith.constant 0 : index
    %63 = vector.load %arg8[%c0_37, %c0_38, %c0_39] : memref<1x8x1xf32, #tpu.memory_space<vmem>>, vector<1x8x1xf32>
    %64 = vector.shape_cast %63 : vector<1x8x1xf32> to vector<8x1xf32>
    %65 = vector.shape_cast %62 : vector<8x1xf32> to vector<1x8x1xf32>
    tpu.vector_store %arg8[%c0_37, %c0_38, %c0_39], %65 {strides = array<i32>} : memref<1x8x1xf32, #tpu.memory_space<vmem>>, vector<1x8x1xf32>,
    %66 = arith.mulf %57, %57 : vector<8x256xf32>
    %cst_40 = arith.constant dense<0.000000e+00> : vector<8xf32>
    %67 = vector.multi_reduction <add>, %66, %cst_40 [1] : vector<8x256xf32> to vector<8xf32>
    %68 = vector.shape_cast %67 : vector<8xf32> to vector<8x1xf32>
    %c0_41 = arith.constant 0 : index
    %c0_42 = arith.constant 0 : index
    %c0_43 = arith.constant 0 : index
    %69 = vector.load %arg9[%c0_41, %c0_42, %c0_43] : memref<1x8x1xf32, #tpu.memory_space<vmem>>, vector<1x8x1xf32>
    %70 = vector.shape_cast %69 : vector<1x8x1xf32> to vector<8x1xf32>
    %71 = vector.shape_cast %68 : vector<8x1xf32> to vector<1x8x1xf32>
    tpu.vector_store %arg9[%c0_41, %c0_42, %c0_43], %71 {strides = array<i32>} : memref<1x8x1xf32, #tpu.memory_space<vmem>>, vector<1x8x1xf32>,
    return
  }
  func.func @transform_0(%arg0: i32) -> (i32, i32, i32) {
    %c0_i32 = arith.constant 0 : i32
    %c0_i32_0 = arith.constant 0 : i32
    %c0_i32_1 = arith.constant 0 : i32
    return %arg0, %c0_i32, %c0_i32_0 : i32, i32, i32
  }
  func.func @transform_1(%arg0: i32) -> (i32, i32) {
    %c0_i32 = arith.constant 0 : i32
    %c0_i32_0 = arith.constant 0 : i32
    %c0_i32_1 = arith.constant 0 : i32
    return %c0_i32, %c0_i32_0 : i32, i32
  }
  func.func @transform_2(%arg0: i32) -> (i32, i32) {
    %c0_i32 = arith.constant 0 : i32
    %c0_i32_0 = arith.constant 0 : i32
    %c0_i32_1 = arith.constant 0 : i32
    return %c0_i32, %c0_i32_0 : i32, i32
  }
  func.func @transform_3(%arg0: i32) -> (i32, i32) {
    %c0_i32 = arith.constant 0 : i32
    %c0_i32_0 = arith.constant 0 : i32
    %c0_i32_1 = arith.constant 0 : i32
    return %c0_i32, %c0_i32_0 : i32, i32
  }
  func.func @transform_4(%arg0: i32) -> (i32, i32) {
    %c0_i32 = arith.constant 0 : i32
    %c0_i32_0 = arith.constant 0 : i32
    %c0_i32_1 = arith.constant 0 : i32
    return %c0_i32, %c0_i32_0 : i32, i32
  }
  func.func @transform_5(%arg0: i32) -> (i32, i32) {
    %c0_i32 = arith.constant 0 : i32
    %c0_i32_0 = arith.constant 0 : i32
    %c0_i32_1 = arith.constant 0 : i32
    return %c0_i32, %c0_i32_0 : i32, i32
  }
  func.func @transform_6(%arg0: i32) -> (i32, i32, i32) {
    %c0_i32 = arith.constant 0 : i32
    %c0_i32_0 = arith.constant 0 : i32
    %c0_i32_1 = arith.constant 0 : i32
    return %arg0, %c0_i32, %c0_i32_0 : i32, i32, i32
  }
  func.func @transform_7(%arg0: i32) -> (i32, i32, i32) {
    %c0_i32 = arith.constant 0 : i32
    %c0_i32_0 = arith.constant 0 : i32
    %c0_i32_1 = arith.constant 0 : i32
    return %arg0, %c0_i32, %c0_i32_0 : i32, i32, i32
  }
  func.func @transform_8(%arg0: i32) -> (i32, i32, i32) {
    %c0_i32 = arith.constant 0 : i32
    %c0_i32_0 = arith.constant 0 : i32
    %c0_i32_1 = arith.constant 0 : i32
    return %arg0, %c0_i32, %c0_i32_0 : i32, i32, i32
  }
}

module attributes {stable_mosaic.version = 11 : i64} {
  func.func @bnrelu_pool_kernel(%arg0: i32, %arg1: memref<1x8x256xf32, #tpu.memory_space<vmem>>, %arg2: memref<8x1xf32, #tpu.memory_space<vmem>>, %arg3: memref<8x1xf32, #tpu.memory_space<vmem>>, %arg4: memref<256x64xf32, #tpu.memory_space<vmem>>, %arg5: memref<1x8x256xf32, #tpu.memory_space<vmem>>, %arg6: memref<1x8x64xf32, #tpu.memory_space<vmem>>) attributes {dimension_semantics = [#tpu.dimension_semantics<parallel>], iteration_bounds = array<i64: 2>, scalar_prefetch = 0 : i64, scratch_operands = 0 : i64, tpu.core_type = #tpu.core_type<tc>, window_params = [{transform_indices = @transform_0, window_bounds = array<i64: 1, 8, 256>}, {pipeline_mode = #tpu.pipeline_mode<synchronous>, transform_indices = @transform_1, window_bounds = array<i64: 8, 1>}, {pipeline_mode = #tpu.pipeline_mode<synchronous>, transform_indices = @transform_2, window_bounds = array<i64: 8, 1>}, {pipeline_mode = #tpu.pipeline_mode<synchronous>, transform_indices = @transform_3, window_bounds = array<i64: 256, 64>}, {transform_indices = @transform_4, window_bounds = array<i64: 1, 8, 256>}, {transform_indices = @transform_5, window_bounds = array<i64: 1, 8, 64>}]} {
    %c0 = arith.constant 0 : index
    %c0_0 = arith.constant 0 : index
    %c0_1 = arith.constant 0 : index
    %0 = vector.load %arg1[%c0, %c0_0, %c0_1] : memref<1x8x256xf32, #tpu.memory_space<vmem>>, vector<1x8x256xf32>
    %1 = vector.shape_cast %0 : vector<1x8x256xf32> to vector<8x256xf32>
    %c0_2 = arith.constant 0 : index
    %c0_3 = arith.constant 0 : index
    %2 = vector.load %arg2[%c0_2, %c0_3] : memref<8x1xf32, #tpu.memory_space<vmem>>, vector<8x1xf32>
    %3 = vector.broadcast %2 : vector<8x1xf32> to vector<8x256xf32>
    %4 = arith.mulf %1, %3 : vector<8x256xf32>
    %c0_4 = arith.constant 0 : index
    %c0_5 = arith.constant 0 : index
    %5 = vector.load %arg3[%c0_4, %c0_5] : memref<8x1xf32, #tpu.memory_space<vmem>>, vector<8x1xf32>
    %6 = vector.broadcast %5 : vector<8x1xf32> to vector<8x256xf32>
    %7 = arith.addf %4, %6 : vector<8x256xf32>
    %cst = arith.constant 0.000000e+00 : f32
    %8 = vector.broadcast %cst : f32 to vector<8x256xf32>
    %9 = arith.maximumf %7, %8 : vector<8x256xf32>
    %c0_6 = arith.constant 0 : index
    %c0_7 = arith.constant 0 : index
    %c0_8 = arith.constant 0 : index
    %10 = vector.load %arg5[%c0_6, %c0_7, %c0_8] : memref<1x8x256xf32, #tpu.memory_space<vmem>>, vector<1x8x256xf32>
    %11 = vector.shape_cast %10 : vector<1x8x256xf32> to vector<8x256xf32>
    %12 = vector.shape_cast %9 : vector<8x256xf32> to vector<1x8x256xf32>
    tpu.vector_store %arg5[%c0_6, %c0_7, %c0_8], %12 {strides = array<i32>} : memref<1x8x256xf32, #tpu.memory_space<vmem>>, vector<1x8x256xf32>,
    %c255_i32 = arith.constant 255 : i32
    %13 = tpu.dynamic_rotate %9 by %c255_i32 dim 1 : vector<8x256xf32>, i32 -> vector<8x256xf32>
    %14 = arith.maximumf %9, %13 : vector<8x256xf32>
    %c240_i32 = arith.constant 240 : i32
    %15 = tpu.dynamic_rotate %14 by %c240_i32 dim 1 : vector<8x256xf32>, i32 -> vector<8x256xf32>
    %16 = arith.maximumf %14, %15 : vector<8x256xf32>
    %c0_9 = arith.constant 0 : index
    %c0_10 = arith.constant 0 : index
    %17 = vector.load %arg4[%c0_9, %c0_10] : memref<256x64xf32, #tpu.memory_space<vmem>>, vector<256x64xf32>
    %cst_11 = arith.constant dense<0.000000e+00> : vector<8x64xf32>
    %18 = tpu.matmul %16, %17, %cst_11 {dimension_numbers = #tpu.dot_dimension_numbers<[1], [0], [0], [1], [0, 0, 1, 1], [], []>} : vector<8x256xf32>, vector<256x64xf32>, vector<8x64xf32> -> vector<8x64xf32>
    %c0_12 = arith.constant 0 : index
    %c0_13 = arith.constant 0 : index
    %c0_14 = arith.constant 0 : index
    %19 = vector.load %arg6[%c0_12, %c0_13, %c0_14] : memref<1x8x64xf32, #tpu.memory_space<vmem>>, vector<1x8x64xf32>
    %20 = vector.shape_cast %19 : vector<1x8x64xf32> to vector<8x64xf32>
    %21 = vector.shape_cast %18 : vector<8x64xf32> to vector<1x8x64xf32>
    tpu.vector_store %arg6[%c0_12, %c0_13, %c0_14], %21 {strides = array<i32>} : memref<1x8x64xf32, #tpu.memory_space<vmem>>, vector<1x8x64xf32>,
    return
  }
  func.func @transform_0(%arg0: i32) -> (i32, i32, i32) {
    %c0_i32 = arith.constant 0 : i32
    %c0_i32_0 = arith.constant 0 : i32
    %c0_i32_1 = arith.constant 0 : i32
    return %arg0, %c0_i32, %c0_i32_0 : i32, i32, i32
  }
  func.func @transform_1(%arg0: i32) -> (i32, i32) {
    %c0_i32 = arith.constant 0 : i32
    %c0_i32_0 = arith.constant 0 : i32
    %c0_i32_1 = arith.constant 0 : i32
    return %c0_i32, %c0_i32_0 : i32, i32
  }
  func.func @transform_2(%arg0: i32) -> (i32, i32) {
    %c0_i32 = arith.constant 0 : i32
    %c0_i32_0 = arith.constant 0 : i32
    %c0_i32_1 = arith.constant 0 : i32
    return %c0_i32, %c0_i32_0 : i32, i32
  }
  func.func @transform_3(%arg0: i32) -> (i32, i32) {
    %c0_i32 = arith.constant 0 : i32
    %c0_i32_0 = arith.constant 0 : i32
    %c0_i32_1 = arith.constant 0 : i32
    return %c0_i32, %c0_i32_0 : i32, i32
  }
  func.func @transform_4(%arg0: i32) -> (i32, i32, i32) {
    %c0_i32 = arith.constant 0 : i32
    %c0_i32_0 = arith.constant 0 : i32
    %c0_i32_1 = arith.constant 0 : i32
    return %arg0, %c0_i32, %c0_i32_0 : i32, i32, i32
  }
  func.func @transform_5(%arg0: i32) -> (i32, i32, i32) {
    %c0_i32 = arith.constant 0 : i32
    %c0_i32_0 = arith.constant 0 : i32
    %c0_i32_1 = arith.constant 0 : i32
    return %arg0, %c0_i32, %c0_i32_0 : i32, i32, i32
  }
}

</mosaic_0001>

<llo_original>
// kernel: encoder_block.3
$region0: #{encoder_block.3}
  #allocation0 [shape = 'u32[]', space=smem, size = 0x4, offset = 0x4, fixed_abs, tag = 'smem constant byte address 0x4 - core index']
  #allocation1 [shape = 'u32[144,128]{1,0:T(1,128)}', space=vmem, size = 0x12000, scoped, tag = 'internal scratch']
  #allocation2 [shape = 'f32[36,256]{1,0:T(8,128)}', space=vmem, size = 0xa000, scoped, tag = 'scratch operand']
  %s0 = inlined_call_operand.vmem [shape: f32[2,4,256], index: 0, kind: input, shape index: {}]
  %s1 = inlined_call_operand.vmem [shape: bf16[8,36], index: 1, kind: input, shape index: {}]
  %s2 = inlined_call_operand.vmem [shape: f32[8,1], index: 2, kind: input, shape index: {}]
  %s3 = inlined_call_operand.vmem [shape: f32[9,256], index: 3, kind: input, shape index: {}]
  %s4 = inlined_call_operand.vmem [shape: f32[2,8,256], index: 4, kind: output, shape index: {0}]
  %s5 = inlined_call_operand.vmem [shape: f32[2,8,1], index: 5, kind: output, shape index: {1}]
  %s6 = inlined_call_operand.vmem [shape: f32[2,8,1], index: 6, kind: output, shape index: {2}]
  %7 = xla_tuple %s4, %s5, %s6
  %s8 = sld [smem:[#allocation0]]
  $region65: #{encoder_block.3} parent=0
    _
  %s10 = ssub.s32 1, %s8
  %s11 = scalar_select 0, %s10, %s8
  loop: start=0, step=1, limit=4
  $region2: #{encoder_block.3} parent=0 // loop_pre_header
    _
  $region3: #{encoder_block.3} parent=0 // loop_header
    %s13 = sphi 0, %s17
    %p14 = scmp.ge.s32.totalorder %s13, 4
    %s23 = sphi 0, %s25
    %s26 = sphi 0, %s23
    %s27 = sphi 0, %s26
    %s43 = sphi 0, %s27
    %s47 = sphi 0, %s47
    %s49 = sphi 0, %s47
    %s50 = sphi 0, %s49
    %s64 = sphi 0, %s50
    %s68 = sphi 0, %s68
    %s70 = sphi 0, %s68
    %s71 = sphi 0, %s70
    %s85 = sphi 0, %s71
    %s89 = sphi 0, %s89
    %s91 = sphi 0, %s89
    %s92 = sphi 0, %s91
    %s106 = sphi 0, %s92
    %s112 = sphi 0, %s114
    %s115 = sphi 0, %s112
    %s116 = sphi 0, %s115
    %s132 = sphi 0, %s116
    %s138 = sphi 0, %s140
    %s141 = sphi 0, %s138
    %s142 = sphi 0, %s141
    %s158 = sphi 0, %s142
    %s164 = sphi 0, %s166
    %s167 = sphi 0, %s164
    %s168 = sphi 0, %s167
    %s184 = sphi 0, %s168
  $region4: #{encoder_block.3} parent=0 // loop_header_branch
    %16 = sbr.rel (%p14) target = $region8
  $region5: #{encoder_block.3} parent=0 // loop_body
    %s18 = ssub.s32 %s13, 1
    %s19 = ssub.s32 %s13, 2
    %s20 = sadd.s32 %s13, 1
    %s21 = ssub.s32 %s13, %s20
    %p22 = scmp.eq.s32.totalorder %s21, 0
    %s24 = sadd.s32 %s23, 1
    %s25 = scalar_select %p22, %s23, %s24
    %p28 = pneg %p22
    %p29 = scmp.eq.s32.totalorder %s13, 1
    %p30 = por %p28, %p29
    %p31 = scmp.ne.s32.totalorder %s23, %s26
    %p32 = scmp.eq.s32.totalorder %s13, 0
    %p33 = por %p31, %p32
    %p34 = scmp.ne.s32.totalorder %s23, %s26
    %p35 = scmp.eq.s32.totalorder %s18, 1
    %p36 = por %p34, %p35
    %p37 = scmp.ne.s32.totalorder %s26, %s27
    %p38 = scmp.eq.s32.totalorder %s18, 0
    %p39 = por %p37, %p38
    %p40 = scmp.ne.s32.totalorder %s26, %s27
    %p41 = scmp.eq.s32.totalorder %s19, 1
    %p42 = por %p40, %p41
    %p44 = scmp.ne.s32.totalorder %s27, %s43
    %p45 = scmp.eq.s32.totalorder %s19, 0
    %p46 = por %p44, %p45
    %s48 = sadd.s32 %s47, 1
    %p51 = scmp.eq.s32.totalorder %s13, 1
    %p52 = scmp.ne.s32.totalorder %s47, %s49
    %p53 = scmp.eq.s32.totalorder %s13, 0
    %p54 = por %p52, %p53
    %p55 = scmp.ne.s32.totalorder %s47, %s49
    %p56 = scmp.eq.s32.totalorder %s18, 1
    %p57 = por %p55, %p56
    %p58 = scmp.ne.s32.totalorder %s49, %s50
    %p59 = scmp.eq.s32.totalorder %s18, 0
    %p60 = por %p58, %p59
    %p61 = scmp.ne.s32.totalorder %s49, %s50
    %p62 = scmp.eq.s32.totalorder %s19, 1
    %p63 = por %p61, %p62
    %p65 = scmp.ne.s32.totalorder %s50, %s64
    %p66 = scmp.eq.s32.totalorder %s19, 0
    %p67 = por %p65, %p66
    %s69 = sadd.s32 %s68, 1
    %p72 = scmp.eq.s32.totalorder %s13, 1
    %p73 = scmp.ne.s32.totalorder %s68, %s70
    %p74 = scmp.eq.s32.totalorder %s13, 0
    %p75 = por %p73, %p74
    %p76 = scmp.ne.s32.totalorder %s68, %s70
    %p77 = scmp.eq.s32.totalorder %s18, 1
    %p78 = por %p76, %p77
    %p79 = scmp.ne.s32.totalorder %s70, %s71
    %p80 = scmp.eq.s32.totalorder %s18, 0
    %p81 = por %p79, %p80
    %p82 = scmp.ne.s32.totalorder %s70, %s71
    %p83 = scmp.eq.s32.totalorder %s19, 1
    %p84 = por %p82, %p83
    %p86 = scmp.ne.s32.totalorder %s71, %s85
    %p87 = scmp.eq.s32.totalorder %s19, 0
    %p88 = por %p86, %p87
    %s90 = sadd.s32 %s89, 1
    %p93 = scmp.eq.s32.totalorder %s13, 1
    %p94 = scmp.ne.s32.totalorder %s89, %s91
    %p95 = scmp.eq.s32.totalorder %s13, 0
    %p96 = por %p94, %p95
    %p97 = scmp.ne.s32.totalorder %s89, %s91
    %p98 = scmp.eq.s32.totalorder %s18, 1
    %p99 = por %p97, %p98
    %p100 = scmp.ne.s32.totalorder %s91, %s92
    %p101 = scmp.eq.s32.totalorder %s18, 0
    %p102 = por %p100, %p101
    %p103 = scmp.ne.s32.totalorder %s91, %s92
    %p104 = scmp.eq.s32.totalorder %s19, 1
    %p105 = por %p103, %p104
    %p107 = scmp.ne.s32.totalorder %s92, %s106
    %p108 = scmp.eq.s32.totalorder %s19, 0
    %p109 = por %p107, %p108
    %s110 = ssub.s32 %s13, %s20
    %p111 = scmp.eq.s32.totalorder %s110, 0
    %s113 = sadd.s32 %s112, 1
    %s114 = scalar_select %p111, %s112, %s113
    %p117 = pneg %p111
    %p118 = scmp.eq.s32.totalorder %s13, 1
    %p119 = por %p117, %p118
    %p120 = scmp.ne.s32.totalorder %s112, %s115
    %p121 = scmp.eq.s32.totalorder %s13, 0
    %p122 = por %p120, %p121
    %p123 = scmp.ne.s32.totalorder %s112, %s115
    %p124 = scmp.eq.s32.totalorder %s18, 1
    %p125 = por %p123, %p124
    %p126 = scmp.ne.s32.totalorder %s115, %s116
    %p127 = scmp.eq.s32.totalorder %s18, 0
    %p128 = por %p126, %p127
    %p129 = scmp.ne.s32.totalorder %s115, %s116
    %p130 = scmp.eq.s32.totalorder %s19, 1
    %p131 = por %p129, %p130
    %p133 = scmp.ne.s32.totalorder %s116, %s132
    %p134 = scmp.eq.s32.totalorder %s19, 0
    %p135 = por %p133, %p134
    %s136 = ssub.s32 %s13, %s20
    %p137 = scmp.eq.s32.totalorder %s136, 0
    %s139 = sadd.s32 %s138, 1
    %s140 = scalar_select %p137, %s138, %s139
    %p143 = pneg %p137
    %p144 = scmp.eq.s32.totalorder %s13, 1
    %p145 = por %p143, %p144
    %p146 = scmp.ne.s32.totalorder %s138, %s141
    %p147 = scmp.eq.s32.totalorder %s13, 0
    %p148 = por %p146, %p147
    %p149 = scmp.ne.s32.totalorder %s138, %s141
    %p150 = scmp.eq.s32.totalorder %s18, 1
    %p151 = por %p149, %p150
    %p152 = scmp.ne.s32.totalorder %s141, %s142
    %p153 = scmp.eq.s32.totalorder %s18, 0
    %p154 = por %p152, %p153
    %p155 = scmp.ne.s32.totalorder %s141, %s142
    %p156 = scmp.eq.s32.totalorder %s19, 1
    %p157 = por %p155, %p156
    %p159 = scmp.ne.s32.totalorder %s142, %s158
    %p160 = scmp.eq.s32.totalorder %s19, 0
    %p161 = por %p159, %p160
    %s162 = ssub.s32 %s13, %s20
    %p163 = scmp.eq.s32.totalorder %s162, 0
    %s165 = sadd.s32 %s164, 1
    %s166 = scalar_select %p163, %s164, %s165
    %p169 = pneg %p163
    %p170 = scmp.eq.s32.totalorder %s13, 1
    %p171 = por %p169, %p170
    %p172 = scmp.ne.s32.totalorder %s164, %s167
    %p173 = scmp.eq.s32.totalorder %s13, 0
    %p174 = por %p172, %p173
    %p175 = scmp.ne.s32.totalorder %s164, %s167
    %p176 = scmp.eq.s32.totalorder %s18, 1
    %p177 = por %p175, %p176
    %p178 = scmp.ne.s32.totalorder %s167, %s168
    %p179 = scmp.eq.s32.totalorder %s18, 0
    %p180 = por %p178, %p179
    %p181 = scmp.ne.s32.totalorder %s167, %s168
    %p182 = scmp.eq.s32.totalorder %s19, 1
    %p183 = por %p181, %p182
    %p185 = scmp.ne.s32.totalorder %s168, %s184
    %p186 = scmp.eq.s32.totalorder %s19, 0
    %p187 = por %p185, %p186
    %p188 = scmp.le.s32.totalorder 1, %s13
    %p189 = scmp.lt.s32.totalorder %s13, 3
    %p190 = pnand %p188, %p189
    %p191 = pneg %p190
    // Predicated region
    $region9: #{encoder_block.3} parent=5 // pred_check
      _
    $region10: #{encoder_block.3} parent=5 // pred_check_branch
      %193 = sbr.rel (%p190) target = $region12
    $region11: #{encoder_block.3} parent=5 // pred_region
      %s194 = ssub.s32 %s13, 1
      // Predicated region
      $region13: #{encoder_block.3} parent=11 // pred_check
        %p195 = pneg %p60
      $region14: #{encoder_block.3} parent=11 // pred_check_branch
        %197 = sbr.rel (%p195) target = $region16
      $region15: #{encoder_block.3} parent=11 // pred_region
        _
      $region16: #{encoder_block.3} parent=11 // pred_fallthru
        _
      // Predicated region
      $region17: #{encoder_block.3} parent=11 // pred_check
        %p198 = pneg %p81
      $region18: #{encoder_block.3} parent=11 // pred_check_branch
        %200 = sbr.rel (%p198) target = $region20
      $region19: #{encoder_block.3} parent=11 // pred_region
        _
      $region20: #{encoder_block.3} parent=11 // pred_fallthru
        _
      // Predicated region
      $region21: #{encoder_block.3} parent=11 // pred_check
        %p201 = pneg %p102
      $region22: #{encoder_block.3} parent=11 // pred_check_branch
        %203 = sbr.rel (%p201) target = $region24
      $region23: #{encoder_block.3} parent=11 // pred_region
        _
      $region24: #{encoder_block.3} parent=11 // pred_fallthru
        _
    $region12: #{encoder_block.3} parent=5 // pred_fallthru
      _
    %p204 = scmp.lt.s32.totalorder %s13, 2
    // Predicated region
    $region25: #{encoder_block.3} parent=5 // pred_check
      %p205 = pneg %p204
    $region26: #{encoder_block.3} parent=5 // pred_check_branch
      %207 = sbr.rel (%p205) target = $region28
    $region27: #{encoder_block.3} parent=5 // pred_region
      // Predicated region
      $region29: #{encoder_block.3} parent=27 // pred_check
        %p208 = pneg %p33
      $region30: #{encoder_block.3} parent=27 // pred_check_branch
        %210 = sbr.rel (%p208) target = $region32
      $region31: #{encoder_block.3} parent=27 // pred_region
        %p211 = scmp.lt.s32.totalorder %s13, 1
        %s212 = scalar_select %p211, %s13, 1
        %s213 = smul.addr %s212, 2
        %s214 = smul.addr %s213, 4
        %s215 = scalar_lea.vmem %s0, %s214
      $region32: #{encoder_block.3} parent=27 // pred_fallthru
        _
    $region28: #{encoder_block.3} parent=5 // pred_fallthru
      _
    %p216 = scmp.le.s32.totalorder 1, %s13
    %p217 = scmp.lt.s32.totalorder %s13, 3
    %p218 = pnand %p216, %p217
    %p219 = pneg %p218
    // Predicated region
    $region33: #{encoder_block.3} parent=5 // pred_check
      _
    $region34: #{encoder_block.3} parent=5 // pred_check_branch
      %221 = sbr.rel (%p218) target = $region36
    $region35: #{encoder_block.3} parent=5 // pred_region
      %s222 = ssub.s32 %s13, 1
      %p223 = scmp.lt.s32.totalorder %s18, 1
      %s224 = scalar_select %p223, %s18, 1
      %s225 = smul.addr %s224, 2
      %s226 = smul.addr %s225, 4
      %s227 = scalar_lea.vmem %s0, %s226
      %p228 = pneg %p39
      %p229 = pneg %p36
      %p230 = pneg %p60
      %p231 = pneg %p57
      %p232 = pneg %p81
      %p233 = pneg %p78
      %p234 = pneg %p102
      %p235 = pneg %p99
      %p236 = pneg %p128
      %p237 = pneg %p125
      %p238 = scmp.lt.s32.totalorder %s18, 1
      %s239 = scalar_select %p238, %s18, 1
      %s240 = smul.addr %s239, 2
      %s241 = smul.addr %s240, 8
      %s242 = scalar_lea.vmem %s4, %s241
      %p243 = pneg %p154
      %p244 = pneg %p151
      %p245 = scmp.lt.s32.totalorder %s18, 1
      %s246 = scalar_select %p245, %s18, 1
      %s247 = smul.addr %s246, 8
      %s248 = scalar_lea.vmem %s5, %s247
      %p249 = pneg %p180
      %p250 = pneg %p177
      %p251 = scmp.lt.s32.totalorder %s18, 1
      %s252 = scalar_select %p251, %s18, 1
      %s253 = smul.addr %s252, 8
      %s254 = scalar_lea.vmem %s6, %s253
      %p255 = scmp.lt.s32.totalorder %s18, 1
      %s256 = scalar_select %p255, %s18, 1
      %s257 = smul.addr %s256, 2
      %s258 = smul.addr %s257, 4
      %s259 = scalar_lea.vmem %s0, %s258
      %p260 = scmp.lt.s32.totalorder %s18, 1
      %s261 = scalar_select %p260, %s18, 1
      %s262 = smul.addr %s261, 2
      %s263 = smul.addr %s262, 8
      %s264 = scalar_lea.vmem %s4, %s263
      %p265 = scmp.lt.s32.totalorder %s18, 1
      %s266 = scalar_select %p265, %s18, 1
      %s267 = smul.addr %s266, 8
      %s268 = scalar_lea.vmem %s5, %s267
      %p269 = scmp.lt.s32.totalorder %s18, 1
      %s270 = scalar_select %p269, %s18, 1
      %s271 = smul.addr %s270, 8
      %s272 = scalar_lea.vmem %s6, %s271
      %v274 = vld [vmem:[%s259] sm:$0xff]
      %v276 = vcombine.high %v274, %v274
      %278 = vrot.lane.b32.xlu0 %v274, 17
      %v279 = vpop.permute.xlu0 %278
      %280 = vrot.lane.b32.xlu0 %v276, 17
      %v281 = vpop.permute.xlu0 %280
      %v282 = vlaneseq
      %v283 = vand.u32 %v282, 127
      %vm284 = vcmp.lt.s32.totalorder %v283, 17
      %v285 = vsel %vm284, %v279, %v281
      %v286 = vsel %vm284, %v281, %v279
      %v287 = vld [vmem:[%s3] ss:$8 sm:$0x3]
      %v289 = vlaneseq
      %v290 = vshrl.u32 %v289, 7
      %v291 = vsub.s32 0, %v290
      %v292 = vrot.slane %v287, %v291
      %v293 = vlaneseq
      %v294 = vshrl.u32 %v293, 7
      %v295 = vsub.s32 1, %v294
      %v296 = vrot.slane %v287, %v295
      %v299 = vmul.f32 %v286, %v292
      %v300 = vmul.f32 %v285, %v296
      %301 = vst [vmem:[#allocation2] sm:$0xf] %v299
      %302 = vst [vmem:[#allocation2 + $0x8] sm:$0xf] %v300
      %303 = vrot.lane.b32.xlu0 %v274, 16
      %v304 = vpop.permute.xlu0 %303
      %305 = vrot.lane.b32.xlu0 %v276, 16
      %v306 = vpop.permute.xlu0 %305
      %vm307 = vcmp.lt.s32.totalorder %v283, 16
      %v308 = vsel %vm307, %v304, %v306
      %v309 = vsel %vm307, %v306, %v304
      %s310 = scalar_lea.vmem %s3, 1
      %v311 = vld [vmem:[%s310] ss:$8 sm:$0x3]
      %v313 = vlaneseq
      %v314 = vshrl.u32 %v313, 7
      %v315 = vsub.s32 0, %v314
      %v316 = vrot.slane %v311, %v315
      %v317 = vlaneseq
      %v318 = vshrl.u32 %v317, 7
      %v319 = vsub.s32 1, %v318
      %v320 = vrot.slane %v311, %v319
      %v323 = vmul.f32 %v309, %v316
      %v324 = vmul.f32 %v308, %v320
      %v327 = vrot.slane %v323, 4
      %v328 = vrot.slane %v324, 4
      %331 = vst [vmem:[#allocation2] sm:$0xf0] %v327
      %332 = vst [vmem:[#allocation2 + $0x8] sm:$0xf0] %v328
      %333 = vrot.lane.b32.xlu0 %v274, 15
      %v334 = vpop.permute.xlu0 %333
      %335 = vrot.lane.b32.xlu0 %v276, 15
      %v336 = vpop.permute.xlu0 %335
      %vm337 = vcmp.lt.s32.totalorder %v283, 15
      %v338 = vsel %vm337, %v334, %v336
      %v339 = vsel %vm337, %v336, %v334
      %s340 = scalar_lea.vmem %s3, 2
      %v341 = vld [vmem:[%s340] ss:$8 sm:$0x3]
      %v343 = vlaneseq
      %v344 = vshrl.u32 %v343, 7
      %v345 = vsub.s32 0, %v344
      %v346 = vrot.slane %v341, %v345
      %v347 = vlaneseq
      %v348 = vshrl.u32 %v347, 7
      %v349 = vsub.s32 1, %v348
      %v350 = vrot.slane %v341, %v349
      %v353 = vmul.f32 %v339, %v346
      %v354 = vmul.f32 %v338, %v350
      %355 = vst [vmem:[#allocation2 + $0x10] sm:$0xf] %v353
      %356 = vst [vmem:[#allocation2 + $0x18] sm:$0xf] %v354
      %357 = vrot.lane.b32.xlu0 %v274, 1
      %v358 = vpop.permute.xlu0 %357
      %359 = vrot.lane.b32.xlu0 %v276, 1
      %v360 = vpop.permute.xlu0 %359
      %vm361 = vcmp.lt.s32.totalorder %v283, 1
      %v362 = vsel %vm361, %v358, %v360
      %v363 = vsel %vm361, %v360, %v358
      %s364 = scalar_lea.vmem %s3, 3
      %v365 = vld [vmem:[%s364] ss:$8 sm:$0x3]
      %v367 = vlaneseq
      %v368 = vshrl.u32 %v367, 7
      %v369 = vsub.s32 0, %v368
      %v370 = vrot.slane %v365, %v369
      %v371 = vlaneseq
      %v372 = vshrl.u32 %v371, 7
      %v373 = vsub.s32 1, %v372
      %v374 = vrot.slane %v365, %v373
      %v377 = vmul.f32 %v363, %v370
      %v378 = vmul.f32 %v362, %v374
      %v381 = vrot.slane %v377, 4
      %v382 = vrot.slane %v378, 4
      %385 = vst [vmem:[#allocation2 + $0x10] sm:$0xf0] %v381
      %386 = vst [vmem:[#allocation2 + $0x18] sm:$0xf0] %v382
      %387 = vst [vmem:[#allocation2 + $0x20] sm:$0xf] %v274
      %388 = vst [vmem:[#allocation2 + $0x28] sm:$0xf] %v276
      %389 = vrot.lane.b32.xlu0 %v274, 127
      %v390 = vpop.permute.xlu0 %389
      %391 = vrot.lane.b32.xlu0 %v276, 127
      %v392 = vpop.permute.xlu0 %391
      %vm393 = vcmp.lt.s32.totalorder %v283, 127
      %v394 = vsel %vm393, %v390, %v392
      %v395 = vsel %vm393, %v392, %v390
      %s396 = scalar_lea.vmem %s3, 5
      %v397 = vld [vmem:[%s396] ss:$8 sm:$0x3]
      %v399 = vlaneseq
      %v400 = vshrl.u32 %v399, 7
      %v401 = vsub.s32 0, %v400
      %v402 = vrot.slane %v397, %v401
      %v403 = vlaneseq
      %v404 = vshrl.u32 %v403, 7
      %v405 = vsub.s32 1, %v404
      %v406 = vrot.slane %v397, %v405
      %v409 = vmul.f32 %v394, %v402
      %v410 = vmul.f32 %v395, %v406
      %v413 = vrot.slane %v409, 4
      %v414 = vrot.slane %v410, 4
      %417 = vst [vmem:[#allocation2 + $0x20] sm:$0xf0] %v413
      %418 = vst [vmem:[#allocation2 + $0x28] sm:$0xf0] %v414
      %419 = vrot.lane.b32.xlu0 %v274, 113
      %v420 = vpop.permute.xlu0 %419
      %421 = vrot.lane.b32.xlu0 %v276, 113
      %v422 = vpop.permute.xlu0 %421
      %vm423 = vcmp.lt.s32.totalorder %v283, 113
      %v424 = vsel %vm423, %v420, %v422
      %v425 = vsel %vm423, %v422, %v420
      %s426 = scalar_lea.vmem %s3, 6
      %v427 = vld [vmem:[%s426] ss:$8 sm:$0x3]
      %v429 = vlaneseq
      %v430 = vshrl.u32 %v429, 7
      %v431 = vsub.s32 0, %v430
      %v432 = vrot.slane %v427, %v431
      %v433 = vlaneseq
      %v434 = vshrl.u32 %v433, 7
      %v435 = vsub.s32 1, %v434
      %v436 = vrot.slane %v427, %v435
      %v439 = vmul.f32 %v424, %v432
      %v440 = vmul.f32 %v425, %v436
      %441 = vst [vmem:[#allocation2 + $0x30] sm:$0xf] %v439
      %442 = vst [vmem:[#allocation2 + $0x38] sm:$0xf] %v440
      %443 = vrot.lane.b32.xlu0 %v274, 112
      %v444 = vpop.permute.xlu0 %443
      %445 = vrot.lane.b32.xlu0 %v276, 112
      %v446 = vpop.permute.xlu0 %445
      %vm447 = vcmp.lt.s32.totalorder %v283, 112
      %v448 = vsel %vm447, %v444, %v446
      %v449 = vsel %vm447, %v446, %v444
      %s450 = scalar_lea.vmem %s3, 7
      %v451 = vld [vmem:[%s450] ss:$8 sm:$0x3]
      %v453 = vlaneseq
      %v454 = vshrl.u32 %v453, 7
      %v455 = vsub.s32 0, %v454
      %v456 = vrot.slane %v451, %v455
      %v457 = vlaneseq
      %v458 = vshrl.u32 %v457, 7
      %v459 = vsub.s32 1, %v458
      %v460 = vrot.slane %v451, %v459
      %v463 = vmul.f32 %v448, %v456
      %v464 = vmul.f32 %v449, %v460
      %v467 = vrot.slane %v463, 4
      %v468 = vrot.slane %v464, 4
      %471 = vst [vmem:[#allocation2 + $0x30] sm:$0xf0] %v467
      %472 = vst [vmem:[#allocation2 + $0x38] sm:$0xf0] %v468
      %473 = vrot.lane.b32.xlu0 %v274, 111
      %v474 = vpop.permute.xlu0 %473
      %475 = vrot.lane.b32.xlu0 %v276, 111
      %v476 = vpop.permute.xlu0 %475
      %vm477 = vcmp.lt.s32.totalorder %v283, 111
      %v478 = vsel %vm477, %v474, %v476
      %v479 = vsel %vm477, %v476, %v474
      %s480 = scalar_lea.vmem %s3, 16
      %v481 = vld [vmem:[%s480] ss:$8 sm:$0x3]
      %v483 = vlaneseq
      %v484 = vshrl.u32 %v483, 7
      %v485 = vsub.s32 0, %v484
      %v486 = vrot.slane %v481, %v485
      %v487 = vlaneseq
      %v488 = vshrl.u32 %v487, 7
      %v489 = vsub.s32 1, %v488
      %v490 = vrot.slane %v481, %v489
      %v493 = vmul.f32 %v478, %v486
      %v494 = vmul.f32 %v479, %v490
      %495 = vst [vmem:[#allocation2 + $0x40] sm:$0xf] %v493
      %496 = vst [vmem:[#allocation2 + $0x48] sm:$0xf] %v494
      %v497 = vld [vmem:[#allocation2] sm:$0xff]
      %v498 = vld [vmem:[#allocation2 + $0x8] sm:$0xff]
      %v499 = vld [vmem:[#allocation2 + $0x10] sm:$0xff]
      %v500 = vld [vmem:[#allocation2 + $0x18] sm:$0xff]
      %v501 = vld [vmem:[#allocation2 + $0x20] sm:$0xff]
      %v502 = vld [vmem:[#allocation2 + $0x28] sm:$0xff]
      %v503 = vld [vmem:[#allocation2 + $0x30] sm:$0xff]
      %v504 = vld [vmem:[#allocation2 + $0x38] sm:$0xff]
      %v505 = vld [vmem:[#allocation2 + $0x40] sm:$0xf]
      %v506 = vld [vmem:[#allocation2 + $0x48] sm:$0xf]
      %v507 = vpack.c.bf16 %v499, %v497
      %v508 = vpack.c.bf16 %v500, %v498
      %v509 = vpack.c.bf16 %v503, %v501
      %v510 = vpack.c.bf16 %v504, %v502
      %v511 = vpack.c.bf16 %v505, %v505
      %v512 = vpack.c.bf16 %v506, %v506
      %v513 = vld [vmem:[%s1] sm:$0xf]
      %v514 = vld [vmem:[%s2] sm:$0xff]
      %516 = vset.pattern.permute.xlu0 0
      %517 = vperm.xlu0 %516, %v514
      %v518 = vpop.permute.xlu0 %517
      %vm520 = vcmask 293888
      %v522 = vsel %vm520, %v513, 0
      %vm524 = vcmask 1041408
      %v526 = vsel %vm524, %v511, 0
      %v529 = vsel %vm524, %v512, 0
      %531 = vmatprep.subr.bf16.mxu0 %v508
      %532 = vmatpush1.bf16.msra.mxu0 %v507
      %533 = vmatprep.subr.bf16.mxu0 %v510
      %534 = vmatpush1.bf16.msra.mxu0 %v509
      %535 = vmatprep.subr.bf16.mxu0 %v529
      %536 = vmatpush1.bf16.msra.mxu0 %v526
      %537 = vmatprep.subr.bf16.mxu0 0
      %538 = vmatpush1.bf16.msra.mxu0 0
      %539 = vmatprep.subr.bf16.mxu0 0
      %540 = vmatpush1.bf16.msra.mxu0 0
      %541 = vmatprep.subr.bf16.mxu0 0
      %542 = vmatpush1.bf16.msra.mxu0 0
      %543 = vmatprep.subr.bf16.mxu0 0
      %544 = vmatpush1.bf16.msra.mxu0 0
      %545 = vmatprep.subr.bf16.mxu0 0
      %546 = vmatpush1.bf16.msra.mxu0 0
      %547 = vmatprep.subr.bf16.mxu0 0
      %548 = vmatpush1.bf16.msra.mxu0 0
      %549 = vmatprep.subr.bf16.mxu0 0
      %550 = vmatpush1.bf16.msra.mxu0 0
      %551 = vmatprep.subr.bf16.mxu0 0
      %552 = vmatpush1.bf16.msra.mxu0 0
      %553 = vmatprep.subr.bf16.mxu0 0
      %554 = vmatpush1.bf16.msra.mxu0 0
      %555 = vmatprep.subr.bf16.mxu0 0
      %556 = vmatpush1.bf16.msra.mxu0 0
      %557 = vmatprep.subr.bf16.mxu0 0
      %558 = vmatpush1.bf16.msra.mxu0 0
      %559 = vmatprep.subr.bf16.mxu0 0
      %560 = vmatpush1.bf16.msra.mxu0 0
      %561 = vmatprep.subr.bf16.mxu0 0
      %562 = vmatpush1.bf16.msra.mxu0 0
      %563 = vmatprep.mubr.bf16.mxu0 0
      %564 = vmatmul.mubr.bf16.gmra.mrb[0].mxu0 %v522
      %v565 = vpop.f32.mrb[0].mxu0
      %v566 = vadd.f32 %v518, %v565
      %v567 = vpop.f32.mrb[0].mxu0
      %v568 = vadd.f32 %v518, %v567
      %v569 = vpop.f32.mrb[0].mxu0
      %v570 = vpop.f32.mrb[0].mxu0
      %571 = vdwg.mxu0
      %572 = vst [vmem:[%s264] sm:$0xff] %v566
      %573 = vst [vmem:[%s264 + $0x8] sm:$0xff] %v568
      %v574 = vadd.f32 %v566, %v568
      %575 = vadd.xlane.f32.xlu0 %v574
      %v576 = vpop.xlane.xlu0 %575
      %vm577 = vcmask 7168
      %578 = vst.msk [vmem:[%s268] sm:$0xff] %vm577, %v576
      %v579 = vmul.f32 %v566, %v566
      %v580 = vmul.f32 %v568, %v568
      %v581 = vadd.f32 %v579, %v580
      %582 = vadd.xlane.f32.xlu0 %v581
      %v583 = vpop.xlane.xlu0 %582
      %584 = vst.msk [vmem:[%s272] sm:$0xff] %vm577, %v583
      %p585 = scmp.lt.s32.totalorder %s18, 1
      %s586 = scalar_select %p585, %s18, 1
      %s587 = smul.addr %s586, 2
      %s588 = smul.addr %s587, 8
      %s589 = scalar_lea.vmem %s4, %s588
      %p590 = scmp.lt.s32.totalorder %s18, 1
      %s591 = scalar_select %p590, %s18, 1
      %s592 = smul.addr %s591, 8
      %s593 = scalar_lea.vmem %s5, %s592
      %p594 = scmp.lt.s32.totalorder %s18, 1
      %s595 = scalar_select %p594, %s18, 1
      %s596 = smul.addr %s595, 8
      %s597 = scalar_lea.vmem %s6, %s596
      // Predicated region
      $region37: #{encoder_block.3} parent=35 // pred_check
        %p598 = pneg %p125
      $region38: #{encoder_block.3} parent=35 // pred_check_branch
        %600 = sbr.rel (%p598) target = $region40
      $region39: #{encoder_block.3} parent=35 // pred_region
        _
      $region40: #{encoder_block.3} parent=35 // pred_fallthru
        _
      // Predicated region
      $region41: #{encoder_block.3} parent=35 // pred_check
        %p601 = pneg %p151
      $region42: #{encoder_block.3} parent=35 // pred_check_branch
        %603 = sbr.rel (%p601) target = $region44
      $region43: #{encoder_block.3} parent=35 // pred_region
        _
      $region44: #{encoder_block.3} parent=35 // pred_fallthru
        _
      // Predicated region
      $region45: #{encoder_block.3} parent=35 // pred_check
        %p604 = pneg %p177
      $region46: #{encoder_block.3} parent=35 // pred_check_branch
        %606 = sbr.rel (%p604) target = $region48
      $region47: #{encoder_block.3} parent=35 // pred_region
        _
      $region48: #{encoder_block.3} parent=35 // pred_fallthru
        _
    $region36: #{encoder_block.3} parent=5 // pred_fallthru
      _
    %p607 = scmp.le.s32.totalorder 2, %s13
    // Predicated region
    $region49: #{encoder_block.3} parent=5 // pred_check
      %p608 = pneg %p607
    $region50: #{encoder_block.3} parent=5 // pred_check_branch
      %610 = sbr.rel (%p608) target = $region52
    $region51: #{encoder_block.3} parent=5 // pred_region
      %s611 = ssub.s32 %s13, 2
      // Predicated region
      $region53: #{encoder_block.3} parent=51 // pred_check
        %p612 = pneg %p131
      $region54: #{encoder_block.3} parent=51 // pred_check_branch
        %614 = sbr.rel (%p612) target = $region56
      $region55: #{encoder_block.3} parent=51 // pred_region
        %p615 = scmp.lt.s32.totalorder %s19, 1
        %s616 = scalar_select %p615, %s19, 1
        %s617 = smul.addr %s616, 2
        %s618 = smul.addr %s617, 8
        %s619 = scalar_lea.vmem %s4, %s618
      $region56: #{encoder_block.3} parent=51 // pred_fallthru
        _
      // Predicated region
      $region57: #{encoder_block.3} parent=51 // pred_check
        %p620 = pneg %p157
      $region58: #{encoder_block.3} parent=51 // pred_check_branch
        %622 = sbr.rel (%p620) target = $region60
      $region59: #{encoder_block.3} parent=51 // pred_region
        %p623 = scmp.lt.s32.totalorder %s19, 1
        %s624 = scalar_select %p623, %s19, 1
        %s625 = smul.addr %s624, 8
        %s626 = scalar_lea.vmem %s5, %s625
      $region60: #{encoder_block.3} parent=51 // pred_fallthru
        _
      // Predicated region
      $region61: #{encoder_block.3} parent=51 // pred_check
        %p627 = pneg %p183
      $region62: #{encoder_block.3} parent=51 // pred_check_branch
        %629 = sbr.rel (%p627) target = $region64
      $region63: #{encoder_block.3} parent=51 // pred_region
        %p630 = scmp.lt.s32.totalorder %s19, 1
        %s631 = scalar_select %p630, %s19, 1
        %s632 = smul.addr %s631, 8
        %s633 = scalar_lea.vmem %s6, %s632
      $region64: #{encoder_block.3} parent=51 // pred_fallthru
        _
    $region52: #{encoder_block.3} parent=5 // pred_fallthru
      _
  $region6: #{encoder_block.3} parent=0 // loop_footer
    %s17 = sadd.s32 1, %s13
  $region7: #{encoder_block.3} parent=0 // loop_footer_branch
    %12 = sbr.rel target = $region3
  $region8: #{encoder_block.3} parent=0 // loop_exit
    _

// kernel: encoder_block.5
$region0: #{encoder_block.5}
  #allocation0 [shape = 'u32[]', space=smem, size = 0x4, offset = 0x4, fixed_abs, tag = 'smem constant byte address 0x4 - core index']
  #allocation1 [shape = 'u32[144,128]{1,0:T(1,128)}', space=vmem, size = 0x12000, scoped, tag = 'internal scratch']
  %s0 = inlined_call_operand.vmem [shape: f32[2,8,256], index: 0, kind: input, shape index: {}]
  %s1 = inlined_call_operand.vmem [shape: f32[8,1], index: 1, kind: input, shape index: {}]
  %s2 = inlined_call_operand.vmem [shape: f32[8,1], index: 2, kind: input, shape index: {}]
  %s3 = inlined_call_operand.vmem [shape: f32[256,64], index: 3, kind: input, shape index: {}]
  %s4 = inlined_call_operand.vmem [shape: f32[2,8,256], index: 4, kind: output, shape index: {0}]
  %s5 = inlined_call_operand.vmem [shape: f32[2,8,64], index: 5, kind: output, shape index: {1}]
  %6 = xla_tuple %s4, %s5
  %s7 = sld [smem:[#allocation0]]
  $region57: #{encoder_block.5} parent=0
    _
  %s9 = ssub.s32 1, %s7
  %s10 = scalar_select 0, %s9, %s7
  loop: start=0, step=1, limit=4
  $region2: #{encoder_block.5} parent=0 // loop_pre_header
    _
  $region3: #{encoder_block.5} parent=0 // loop_header
    %s12 = sphi 0, %s16
    %p13 = scmp.ge.s32.totalorder %s12, 4
    %s22 = sphi 0, %s24
    %s25 = sphi 0, %s22
    %s26 = sphi 0, %s25
    %s42 = sphi 0, %s26
    %s46 = sphi 0, %s46
    %s48 = sphi 0, %s46
    %s49 = sphi 0, %s48
    %s63 = sphi 0, %s49
    %s67 = sphi 0, %s67
    %s69 = sphi 0, %s67
    %s70 = sphi 0, %s69
    %s84 = sphi 0, %s70
    %s88 = sphi 0, %s88
    %s90 = sphi 0, %s88
    %s91 = sphi 0, %s90
    %s105 = sphi 0, %s91
    %s111 = sphi 0, %s113
    %s114 = sphi 0, %s111
    %s115 = sphi 0, %s114
    %s131 = sphi 0, %s115
    %s137 = sphi 0, %s139
    %s140 = sphi 0, %s137
    %s141 = sphi 0, %s140
    %s157 = sphi 0, %s141
  $region4: #{encoder_block.5} parent=0 // loop_header_branch
    %15 = sbr.rel (%p13) target = $region8
  $region5: #{encoder_block.5} parent=0 // loop_body
    %s17 = ssub.s32 %s12, 1
    %s18 = ssub.s32 %s12, 2
    %s19 = sadd.s32 %s12, 1
    %s20 = ssub.s32 %s12, %s19
    %p21 = scmp.eq.s32.totalorder %s20, 0
    %s23 = sadd.s32 %s22, 1
    %s24 = scalar_select %p21, %s22, %s23
    %p27 = pneg %p21
    %p28 = scmp.eq.s32.totalorder %s12, 1
    %p29 = por %p27, %p28
    %p30 = scmp.ne.s32.totalorder %s22, %s25
    %p31 = scmp.eq.s32.totalorder %s12, 0
    %p32 = por %p30, %p31
    %p33 = scmp.ne.s32.totalorder %s22, %s25
    %p34 = scmp.eq.s32.totalorder %s17, 1
    %p35 = por %p33, %p34
    %p36 = scmp.ne.s32.totalorder %s25, %s26
    %p37 = scmp.eq.s32.totalorder %s17, 0
    %p38 = por %p36, %p37
    %p39 = scmp.ne.s32.totalorder %s25, %s26
    %p40 = scmp.eq.s32.totalorder %s18, 1
    %p41 = por %p39, %p40
    %p43 = scmp.ne.s32.totalorder %s26, %s42
    %p44 = scmp.eq.s32.totalorder %s18, 0
    %p45 = por %p43, %p44
    %s47 = sadd.s32 %s46, 1
    %p50 = scmp.eq.s32.totalorder %s12, 1
    %p51 = scmp.ne.s32.totalorder %s46, %s48
    %p52 = scmp.eq.s32.totalorder %s12, 0
    %p53 = por %p51, %p52
    %p54 = scmp.ne.s32.totalorder %s46, %s48
    %p55 = scmp.eq.s32.totalorder %s17, 1
    %p56 = por %p54, %p55
    %p57 = scmp.ne.s32.totalorder %s48, %s49
    %p58 = scmp.eq.s32.totalorder %s17, 0
    %p59 = por %p57, %p58
    %p60 = scmp.ne.s32.totalorder %s48, %s49
    %p61 = scmp.eq.s32.totalorder %s18, 1
    %p62 = por %p60, %p61
    %p64 = scmp.ne.s32.totalorder %s49, %s63
    %p65 = scmp.eq.s32.totalorder %s18, 0
    %p66 = por %p64, %p65
    %s68 = sadd.s32 %s67, 1
    %p71 = scmp.eq.s32.totalorder %s12, 1
    %p72 = scmp.ne.s32.totalorder %s67, %s69
    %p73 = scmp.eq.s32.totalorder %s12, 0
    %p74 = por %p72, %p73
    %p75 = scmp.ne.s32.totalorder %s67, %s69
    %p76 = scmp.eq.s32.totalorder %s17, 1
    %p77 = por %p75, %p76
    %p78 = scmp.ne.s32.totalorder %s69, %s70
    %p79 = scmp.eq.s32.totalorder %s17, 0
    %p80 = por %p78, %p79
    %p81 = scmp.ne.s32.totalorder %s69, %s70
    %p82 = scmp.eq.s32.totalorder %s18, 1
    %p83 = por %p81, %p82
    %p85 = scmp.ne.s32.totalorder %s70, %s84
    %p86 = scmp.eq.s32.totalorder %s18, 0
    %p87 = por %p85, %p86
    %s89 = sadd.s32 %s88, 1
    %p92 = scmp.eq.s32.totalorder %s12, 1
    %p93 = scmp.ne.s32.totalorder %s88, %s90
    %p94 = scmp.eq.s32.totalorder %s12, 0
    %p95 = por %p93, %p94
    %p96 = scmp.ne.s32.totalorder %s88, %s90
    %p97 = scmp.eq.s32.totalorder %s17, 1
    %p98 = por %p96, %p97
    %p99 = scmp.ne.s32.totalorder %s90, %s91
    %p100 = scmp.eq.s32.totalorder %s17, 0
    %p101 = por %p99, %p100
    %p102 = scmp.ne.s32.totalorder %s90, %s91
    %p103 = scmp.eq.s32.totalorder %s18, 1
    %p104 = por %p102, %p103
    %p106 = scmp.ne.s32.totalorder %s91, %s105
    %p107 = scmp.eq.s32.totalorder %s18, 0
    %p108 = por %p106, %p107
    %s109 = ssub.s32 %s12, %s19
    %p110 = scmp.eq.s32.totalorder %s109, 0
    %s112 = sadd.s32 %s111, 1
    %s113 = scalar_select %p110, %s111, %s112
    %p116 = pneg %p110
    %p117 = scmp.eq.s32.totalorder %s12, 1
    %p118 = por %p116, %p117
    %p119 = scmp.ne.s32.totalorder %s111, %s114
    %p120 = scmp.eq.s32.totalorder %s12, 0
    %p121 = por %p119, %p120
    %p122 = scmp.ne.s32.totalorder %s111, %s114
    %p123 = scmp.eq.s32.totalorder %s17, 1
    %p124 = por %p122, %p123
    %p125 = scmp.ne.s32.totalorder %s114, %s115
    %p126 = scmp.eq.s32.totalorder %s17, 0
    %p127 = por %p125, %p126
    %p128 = scmp.ne.s32.totalorder %s114, %s115
    %p129 = scmp.eq.s32.totalorder %s18, 1
    %p130 = por %p128, %p129
    %p132 = scmp.ne.s32.totalorder %s115, %s131
    %p133 = scmp.eq.s32.totalorder %s18, 0
    %p134 = por %p132, %p133
    %s135 = ssub.s32 %s12, %s19
    %p136 = scmp.eq.s32.totalorder %s135, 0
    %s138 = sadd.s32 %s137, 1
    %s139 = scalar_select %p136, %s137, %s138
    %p142 = pneg %p136
    %p143 = scmp.eq.s32.totalorder %s12, 1
    %p144 = por %p142, %p143
    %p145 = scmp.ne.s32.totalorder %s137, %s140
    %p146 = scmp.eq.s32.totalorder %s12, 0
    %p147 = por %p145, %p146
    %p148 = scmp.ne.s32.totalorder %s137, %s140
    %p149 = scmp.eq.s32.totalorder %s17, 1
    %p150 = por %p148, %p149
    %p151 = scmp.ne.s32.totalorder %s140, %s141
    %p152 = scmp.eq.s32.totalorder %s17, 0
    %p153 = por %p151, %p152
    %p154 = scmp.ne.s32.totalorder %s140, %s141
    %p155 = scmp.eq.s32.totalorder %s18, 1
    %p156 = por %p154, %p155
    %p158 = scmp.ne.s32.totalorder %s141, %s157
    %p159 = scmp.eq.s32.totalorder %s18, 0
    %p160 = por %p158, %p159
    %p161 = scmp.le.s32.totalorder 1, %s12
    %p162 = scmp.lt.s32.totalorder %s12, 3
    %p163 = pnand %p161, %p162
    %p164 = pneg %p163
    // Predicated region
    $region9: #{encoder_block.5} parent=5 // pred_check
      _
    $region10: #{encoder_block.5} parent=5 // pred_check_branch
      %166 = sbr.rel (%p163) target = $region12
    $region11: #{encoder_block.5} parent=5 // pred_region
      %s167 = ssub.s32 %s12, 1
      // Predicated region
      $region13: #{encoder_block.5} parent=11 // pred_check
        %p168 = pneg %p59
      $region14: #{encoder_block.5} parent=11 // pred_check_branch
        %170 = sbr.rel (%p168) target = $region16
      $region15: #{encoder_block.5} parent=11 // pred_region
        _
      $region16: #{encoder_block.5} parent=11 // pred_fallthru
        _
      // Predicated region
      $region17: #{encoder_block.5} parent=11 // pred_check
        %p171 = pneg %p80
      $region18: #{encoder_block.5} parent=11 // pred_check_branch
        %173 = sbr.rel (%p171) target = $region20
      $region19: #{encoder_block.5} parent=11 // pred_region
        _
      $region20: #{encoder_block.5} parent=11 // pred_fallthru
        _
      // Predicated region
      $region21: #{encoder_block.5} parent=11 // pred_check
        %p174 = pneg %p101
      $region22: #{encoder_block.5} parent=11 // pred_check_branch
        %176 = sbr.rel (%p174) target = $region24
      $region23: #{encoder_block.5} parent=11 // pred_region
        _
      $region24: #{encoder_block.5} parent=11 // pred_fallthru
        _
    $region12: #{encoder_block.5} parent=5 // pred_fallthru
      _
    %p177 = scmp.lt.s32.totalorder %s12, 2
    // Predicated region
    $region25: #{encoder_block.5} parent=5 // pred_check
      %p178 = pneg %p177
    $region26: #{encoder_block.5} parent=5 // pred_check_branch
      %180 = sbr.rel (%p178) target = $region28
    $region27: #{encoder_block.5} parent=5 // pred_region
      // Predicated region
      $region29: #{encoder_block.5} parent=27 // pred_check
        %p181 = pneg %p32
      $region30: #{encoder_block.5} parent=27 // pred_check_branch
        %183 = sbr.rel (%p181) target = $region32
      $region31: #{encoder_block.5} parent=27 // pred_region
        %p184 = scmp.lt.s32.totalorder %s12, 1
        %s185 = scalar_select %p184, %s12, 1
        %s186 = smul.addr %s185, 2
        %s187 = smul.addr %s186, 8
        %s188 = scalar_lea.vmem %s0, %s187
      $region32: #{encoder_block.5} parent=27 // pred_fallthru
        _
    $region28: #{encoder_block.5} parent=5 // pred_fallthru
      _
    %p189 = scmp.le.s32.totalorder 1, %s12
    %p190 = scmp.lt.s32.totalorder %s12, 3
    %p191 = pnand %p189, %p190
    %p192 = pneg %p191
    // Predicated region
    $region33: #{encoder_block.5} parent=5 // pred_check
      _
    $region34: #{encoder_block.5} parent=5 // pred_check_branch
      %194 = sbr.rel (%p191) target = $region36
    $region35: #{encoder_block.5} parent=5 // pred_region
      %s195 = ssub.s32 %s12, 1
      %p196 = scmp.lt.s32.totalorder %s17, 1
      %s197 = scalar_select %p196, %s17, 1
      %s198 = smul.addr %s197, 2
      %s199 = smul.addr %s198, 8
      %s200 = scalar_lea.vmem %s0, %s199
      %p201 = pneg %p38
      %p202 = pneg %p35
      %p203 = pneg %p59
      %p204 = pneg %p56
      %p205 = pneg %p80
      %p206 = pneg %p77
      %p207 = pneg %p101
      %p208 = pneg %p98
      %p209 = pneg %p127
      %p210 = pneg %p124
      %p211 = scmp.lt.s32.totalorder %s17, 1
      %s212 = scalar_select %p211, %s17, 1
      %s213 = smul.addr %s212, 2
      %s214 = smul.addr %s213, 8
      %s215 = scalar_lea.vmem %s4, %s214
      %p216 = pneg %p153
      %p217 = pneg %p150
      %p218 = scmp.lt.s32.totalorder %s17, 1
      %s219 = scalar_select %p218, %s17, 1
      %s220 = smul.addr %s219, 8
      %s221 = scalar_lea.vmem %s5, %s220
      %p222 = scmp.lt.s32.totalorder %s17, 1
      %s223 = scalar_select %p222, %s17, 1
      %s224 = smul.addr %s223, 2
      %s225 = smul.addr %s224, 8
      %s226 = scalar_lea.vmem %s0, %s225
      %p227 = scmp.lt.s32.totalorder %s17, 1
      %s228 = scalar_select %p227, %s17, 1
      %s229 = smul.addr %s228, 2
      %s230 = smul.addr %s229, 8
      %s231 = scalar_lea.vmem %s4, %s230
      %p232 = scmp.lt.s32.totalorder %s17, 1
      %s233 = scalar_select %p232, %s17, 1
      %s234 = smul.addr %s233, 8
      %s235 = scalar_lea.vmem %s5, %s234
      %v236 = vld [vmem:[%s226] sm:$0xff]
      %v237 = vld [vmem:[%s226 + $0x8] sm:$0xff]
      %v238 = vld [vmem:[%s1] sm:$0xff]
      %240 = vset.pattern.permute.xlu0 0
      %241 = vperm.xlu0 %240, %v238
      %v242 = vpop.permute.xlu0 %241
      %v244 = vmul.f32 %v236, %v242
      %v245 = vmul.f32 %v237, %v242
      %v246 = vld [vmem:[%s2] sm:$0xff]
      %248 = vset.pattern.permute.xlu0 0
      %249 = vperm.xlu0 %248, %v246
      %v250 = vpop.permute.xlu0 %249
      %v252 = vadd.f32 %v244, %v250
      %v253 = vadd.f32 %v245, %v250
      %v254 = vmax.f32 %v252, 0.0
      %v255 = vmax.f32 %v253, 0.0
      %256 = vst [vmem:[%s231] sm:$0xff] %v254
      %257 = vst [vmem:[%s231 + $0x8] sm:$0xff] %v255
      %258 = vrot.lane.b32.xlu0 %v254, 127
      %v259 = vpop.permute.xlu0 %258
      %260 = vrot.lane.b32.xlu0 %v255, 127
      %v261 = vpop.permute.xlu0 %260
      %v262 = vlaneseq
      %v263 = vand.u32 %v262, 127
      %vm264 = vcmp.lt.s32.totalorder %v263, 127
      %v265 = vsel %vm264, %v259, %v261
      %v266 = vsel %vm264, %v261, %v259
      %v267 = vmax.f32 %v254, %v265
      %v268 = vmax.f32 %v255, %v266
      %269 = vrot.lane.b32.xlu0 %v267, 112
      %v270 = vpop.permute.xlu0 %269
      %271 = vrot.lane.b32.xlu0 %v268, 112
      %v272 = vpop.permute.xlu0 %271
      %vm273 = vcmp.lt.s32.totalorder %v263, 112
      %v274 = vsel %vm273, %v270, %v272
      %v275 = vsel %vm273, %v272, %v270
      %v276 = vmax.f32 %v267, %v274
      %v277 = vmax.f32 %v268, %v275
      %v278 = vld [vmem:[%s3] sm:$0xff]
      %v279 = vld [vmem:[%s3 + $0x8] sm:$0xff]
      %v280 = vld [vmem:[%s3 + $0x10] sm:$0xff]
      %v281 = vld [vmem:[%s3 + $0x18] sm:$0xff]
      %v282 = vld [vmem:[%s3 + $0x20] sm:$0xff]
      %v283 = vld [vmem:[%s3 + $0x28] sm:$0xff]
      %v284 = vld [vmem:[%s3 + $0x30] sm:$0xff]
      %v285 = vld [vmem:[%s3 + $0x38] sm:$0xff]
      %v286 = vld [vmem:[%s3 + $0x40] sm:$0xff]
      %v287 = vld [vmem:[%s3 + $0x48] sm:$0xff]
      %v288 = vld [vmem:[%s3 + $0x50] sm:$0xff]
      %v289 = vld [vmem:[%s3 + $0x58] sm:$0xff]
      %v290 = vld [vmem:[%s3 + $0x60] sm:$0xff]
      %v291 = vld [vmem:[%s3 + $0x68] sm:$0xff]
      %v292 = vld [vmem:[%s3 + $0x70] sm:$0xff]
      %v293 = vld [vmem:[%s3 + $0x78] sm:$0xff]
      %v294 = vld [vmem:[%s3 + $0x80] sm:$0xff]
      %v295 = vld [vmem:[%s3 + $0x88] sm:$0xff]
      %v296 = vld [vmem:[%s3 + $0x90] sm:$0xff]
      %v297 = vld [vmem:[%s3 + $0x98] sm:$0xff]
      %v298 = vld [vmem:[%s3 + $0xa0] sm:$0xff]
      %v299 = vld [vmem:[%s3 + $0xa8] sm:$0xff]
      %v300 = vld [vmem:[%s3 + $0xb0] sm:$0xff]
      %v301 = vld [vmem:[%s3 + $0xb8] sm:$0xff]
      %v302 = vld [vmem:[%s3 + $0xc0] sm:$0xff]
      %v303 = vld [vmem:[%s3 + $0xc8] sm:$0xff]
      %v304 = vld [vmem:[%s3 + $0xd0] sm:$0xff]
      %v305 = vld [vmem:[%s3 + $0xd8] sm:$0xff]
      %v306 = vld [vmem:[%s3 + $0xe0] sm:$0xff]
      %v307 = vld [vmem:[%s3 + $0xe8] sm:$0xff]
      %v308 = vld [vmem:[%s3 + $0xf0] sm:$0xff]
      %v309 = vld [vmem:[%s3 + $0xf8] sm:$0xff]
      %310 = vmatprep.subr.mxu0 0.0
      %311 = vmatpush1.msra.mxu0 %v278
      %312 = vmatprep.subr.mxu0 0.0
      %313 = vmatpush1.msra.mxu0 %v279
      %314 = vmatprep.subr.mxu0 0.0
      %315 = vmatpush1.msra.mxu0 %v280
      %316 = vmatprep.subr.mxu0 0.0
      %317 = vmatpush1.msra.mxu0 %v281
      %318 = vmatprep.subr.mxu0 0.0
      %319 = vmatpush1.msra.mxu0 %v282
      %320 = vmatprep.subr.mxu0 0.0
      %321 = vmatpush1.msra.mxu0 %v283
      %322 = vmatprep.subr.mxu0 0.0
      %323 = vmatpush1.msra.mxu0 %v284
      %324 = vmatprep.subr.mxu0 0.0
      %325 = vmatpush1.msra.mxu0 %v285
      %326 = vmatprep.subr.mxu0 0.0
      %327 = vmatpush1.msra.mxu0 %v286
      %328 = vmatprep.subr.mxu0 0.0
      %329 = vmatpush1.msra.mxu0 %v287
      %330 = vmatprep.subr.mxu0 0.0
      %331 = vmatpush1.msra.mxu0 %v288
      %332 = vmatprep.subr.mxu0 0.0
      %333 = vmatpush1.msra.mxu0 %v289
      %334 = vmatprep.subr.mxu0 0.0
      %335 = vmatpush1.msra.mxu0 %v290
      %336 = vmatprep.subr.mxu0 0.0
      %337 = vmatpush1.msra.mxu0 %v291
      %338 = vmatprep.subr.mxu0 0.0
      %339 = vmatpush1.msra.mxu0 %v292
      %340 = vmatprep.subr.mxu0 0.0
      %341 = vmatpush1.msra.mxu0 %v293
      %342 = vmatprep.subr.mxu0 0.0
      %343 = vmatpush1.msra.mxu0 %v294
      %344 = vmatprep.subr.mxu0 0.0
      %345 = vmatpush1.msra.mxu0 %v295
      %346 = vmatprep.subr.mxu0 0.0
      %347 = vmatpush1.msra.mxu0 %v296
      %348 = vmatprep.subr.mxu0 0.0
      %349 = vmatpush1.msra.mxu0 %v297
      %350 = vmatprep.subr.mxu0 0.0
      %351 = vmatpush1.msra.mxu0 %v298
      %352 = vmatprep.subr.mxu0 0.0
      %353 = vmatpush1.msra.mxu0 %v299
      %354 = vmatprep.subr.mxu0 0.0
      %355 = vmatpush1.msra.mxu0 %v300
      %356 = vmatprep.subr.mxu0 0.0
      %357 = vmatpush1.msra.mxu0 %v301
      %358 = vmatprep.subr.mxu0 0.0
      %359 = vmatpush1.msra.mxu0 %v302
      %360 = vmatprep.subr.mxu0 0.0
      %361 = vmatpush1.msra.mxu0 %v303
      %362 = vmatprep.subr.mxu0 0.0
      %363 = vmatpush1.msra.mxu0 %v304
      %364 = vmatprep.subr.mxu0 0.0
      %365 = vmatpush1.msra.mxu0 %v305
      %366 = vmatprep.subr.mxu0 0.0
      %367 = vmatpush1.msra.mxu0 %v306
      %368 = vmatprep.subr.mxu0 0.0
      %369 = vmatpush1.msra.mxu0 %v307
      %370 = vmatprep.subr.mxu0 0.0
      %371 = vmatpush1.msra.mxu0 %v308
      %372 = vmatprep.subr.mxu0 0.0
      %373 = vmatpush1.msra.mxu0 %v309
      %374 = vmatprep.mubr.f32.mxu0 %v277
      %375 = vmatmul.mubr.f32.gmra.mrb[0].mxu0 %v276
      %v376 = vpop.f32.mrb[0].mxu0
      %v377 = vadd.f32 0.0, %v376
      %v378 = vpop.f32.mrb[0].mxu0
      %379 = vdwg.mxu0
      %vm380 = vcmask 523264
      %381 = vst.msk [vmem:[%s235] sm:$0xff] %vm380, %v377
      %p382 = scmp.lt.s32.totalorder %s17, 1
      %s383 = scalar_select %p382, %s17, 1
      %s384 = smul.addr %s383, 2
      %s385 = smul.addr %s384, 8
      %s386 = scalar_lea.vmem %s4, %s385
      %p387 = scmp.lt.s32.totalorder %s17, 1
      %s388 = scalar_select %p387, %s17, 1
      %s389 = smul.addr %s388, 8
      %s390 = scalar_lea.vmem %s5, %s389
      // Predicated region
      $region37: #{encoder_block.5} parent=35 // pred_check
        %p391 = pneg %p124
      $region38: #{encoder_block.5} parent=35 // pred_check_branch
        %393 = sbr.rel (%p391) target = $region40
      $region39: #{encoder_block.5} parent=35 // pred_region
        _
      $region40: #{encoder_block.5} parent=35 // pred_fallthru
        _
      // Predicated region
      $region41: #{encoder_block.5} parent=35 // pred_check
        %p394 = pneg %p150
      $region42: #{encoder_block.5} parent=35 // pred_check_branch
        %396 = sbr.rel (%p394) target = $region44
      $region43: #{encoder_block.5} parent=35 // pred_region
        _
      $region44: #{encoder_block.5} parent=35 // pred_fallthru
        _
    $region36: #{encoder_block.5} parent=5 // pred_fallthru
      _
    %p397 = scmp.le.s32.totalorder 2, %s12
    // Predicated region
    $region45: #{encoder_block.5} parent=5 // pred_check
      %p398 = pneg %p397
    $region46: #{encoder_block.5} parent=5 // pred_check_branch
      %400 = sbr.rel (%p398) target = $region48
    $region47: #{encoder_block.5} parent=5 // pred_region
      %s401 = ssub.s32 %s12, 2
      // Predicated region
      $region49: #{encoder_block.5} parent=47 // pred_check
        %p402 = pneg %p130
      $region50: #{encoder_block.5} parent=47 // pred_check_branch
        %404 = sbr.rel (%p402) target = $region52
      $region51: #{encoder_block.5} parent=47 // pred_region
        %p405 = scmp.lt.s32.totalorder %s18, 1
        %s406 = scalar_select %p405, %s18, 1
        %s407 = smul.addr %s406, 2
        %s408 = smul.addr %s407, 8
        %s409 = scalar_lea.vmem %s4, %s408
      $region52: #{encoder_block.5} parent=47 // pred_fallthru
        _
      // Predicated region
      $region53: #{encoder_block.5} parent=47 // pred_check
        %p410 = pneg %p156
      $region54: #{encoder_block.5} parent=47 // pred_check_branch
        %412 = sbr.rel (%p410) target = $region56
      $region55: #{encoder_block.5} parent=47 // pred_region
        %p413 = scmp.lt.s32.totalorder %s18, 1
        %s414 = scalar_select %p413, %s18, 1
        %s415 = smul.addr %s414, 8
        %s416 = scalar_lea.vmem %s5, %s415
      $region56: #{encoder_block.5} parent=47 // pred_fallthru
        _
    $region48: #{encoder_block.5} parent=5 // pred_fallthru
      _
  $region6: #{encoder_block.5} parent=0 // loop_footer
    %s16 = sadd.s32 1, %s12
  $region7: #{encoder_block.5} parent=0 // loop_footer_branch
    %11 = sbr.rel target = $region3
  $region8: #{encoder_block.5} parent=0 // loop_exit
    _

// kernel: encoder_block.4
$region0: #{encoder_block.4}
  #allocation0 [shape = 'u32[]', space=smem, size = 0x4, offset = 0x4, fixed_abs, tag = 'smem constant byte address 0x4 - core index']
  #allocation1 [shape = 'u32[144,128]{1,0:T(1,128)}', space=vmem, size = 0x12000, scoped, tag = 'internal scratch']
  #allocation2 [shape = 'f32[72,256]{1,0:T(8,128)}', space=vmem, size = 0x12000, scoped, tag = 'scratch operand']
  %s0 = inlined_call_operand.vmem [shape: f32[2,8,256], index: 0, kind: input, shape index: {}]
  %s1 = inlined_call_operand.vmem [shape: f32[8,1], index: 1, kind: input, shape index: {}]
  %s2 = inlined_call_operand.vmem [shape: f32[8,1], index: 2, kind: input, shape index: {}]
  %s3 = inlined_call_operand.vmem [shape: bf16[8,72], index: 3, kind: input, shape index: {}]
  %s4 = inlined_call_operand.vmem [shape: f32[8,1], index: 4, kind: input, shape index: {}]
  %s5 = inlined_call_operand.vmem [shape: f32[9,256], index: 5, kind: input, shape index: {}]
  %s6 = inlined_call_operand.vmem [shape: f32[2,8,256], index: 6, kind: output, shape index: {0}]
  %s7 = inlined_call_operand.vmem [shape: f32[2,8,1], index: 7, kind: output, shape index: {1}]
  %s8 = inlined_call_operand.vmem [shape: f32[2,8,1], index: 8, kind: output, shape index: {2}]
  %9 = xla_tuple %s6, %s7, %s8
  %s10 = sld [smem:[#allocation0]]
  $region73: #{encoder_block.4} parent=0
    _
  %s12 = ssub.s32 1, %s10
  %s13 = scalar_select 0, %s12, %s10
  loop: start=0, step=1, limit=4
  $region2: #{encoder_block.4} parent=0 // loop_pre_header
    _
  $region3: #{encoder_block.4} parent=0 // loop_header
    %s15 = sphi 0, %s19
    %p16 = scmp.ge.s32.totalorder %s15, 4
    %s25 = sphi 0, %s27
    %s28 = sphi 0, %s25
    %s29 = sphi 0, %s28
    %s45 = sphi 0, %s29
    %s49 = sphi 0, %s49
    %s51 = sphi 0, %s49
    %s52 = sphi 0, %s51
    %s66 = sphi 0, %s52
    %s70 = sphi 0, %s70
    %s72 = sphi 0, %s70
    %s73 = sphi 0, %s72
    %s87 = sphi 0, %s73
    %s91 = sphi 0, %s91
    %s93 = sphi 0, %s91
    %s94 = sphi 0, %s93
    %s108 = sphi 0, %s94
    %s112 = sphi 0, %s112
    %s114 = sphi 0, %s112
    %s115 = sphi 0, %s114
    %s129 = sphi 0, %s115
    %s133 = sphi 0, %s133
    %s135 = sphi 0, %s133
    %s136 = sphi 0, %s135
    %s150 = sphi 0, %s136
    %s156 = sphi 0, %s158
    %s159 = sphi 0, %s156
    %s160 = sphi 0, %s159
    %s176 = sphi 0, %s160
    %s182 = sphi 0, %s184
    %s185 = sphi 0, %s182
    %s186 = sphi 0, %s185
    %s202 = sphi 0, %s186
    %s208 = sphi 0, %s210
    %s211 = sphi 0, %s208
    %s212 = sphi 0, %s211
    %s228 = sphi 0, %s212
  $region4: #{encoder_block.4} parent=0 // loop_header_branch
    %18 = sbr.rel (%p16) target = $region8
  $region5: #{encoder_block.4} parent=0 // loop_body
    %s20 = ssub.s32 %s15, 1
    %s21 = ssub.s32 %s15, 2
    %s22 = sadd.s32 %s15, 1
    %s23 = ssub.s32 %s15, %s22
    %p24 = scmp.eq.s32.totalorder %s23, 0
    %s26 = sadd.s32 %s25, 1
    %s27 = scalar_select %p24, %s25, %s26
    %p30 = pneg %p24
    %p31 = scmp.eq.s32.totalorder %s15, 1
    %p32 = por %p30, %p31
    %p33 = scmp.ne.s32.totalorder %s25, %s28
    %p34 = scmp.eq.s32.totalorder %s15, 0
    %p35 = por %p33, %p34
    %p36 = scmp.ne.s32.totalorder %s25, %s28
    %p37 = scmp.eq.s32.totalorder %s20, 1
    %p38 = por %p36, %p37
    %p39 = scmp.ne.s32.totalorder %s28, %s29
    %p40 = scmp.eq.s32.totalorder %s20, 0
    %p41 = por %p39, %p40
    %p42 = scmp.ne.s32.totalorder %s28, %s29
    %p43 = scmp.eq.s32.totalorder %s21, 1
    %p44 = por %p42, %p43
    %p46 = scmp.ne.s32.totalorder %s29, %s45
    %p47 = scmp.eq.s32.totalorder %s21, 0
    %p48 = por %p46, %p47
    %s50 = sadd.s32 %s49, 1
    %p53 = scmp.eq.s32.totalorder %s15, 1
    %p54 = scmp.ne.s32.totalorder %s49, %s51
    %p55 = scmp.eq.s32.totalorder %s15, 0
    %p56 = por %p54, %p55
    %p57 = scmp.ne.s32.totalorder %s49, %s51
    %p58 = scmp.eq.s32.totalorder %s20, 1
    %p59 = por %p57, %p58
    %p60 = scmp.ne.s32.totalorder %s51, %s52
    %p61 = scmp.eq.s32.totalorder %s20, 0
    %p62 = por %p60, %p61
    %p63 = scmp.ne.s32.totalorder %s51, %s52
    %p64 = scmp.eq.s32.totalorder %s21, 1
    %p65 = por %p63, %p64
    %p67 = scmp.ne.s32.totalorder %s52, %s66
    %p68 = scmp.eq.s32.totalorder %s21, 0
    %p69 = por %p67, %p68
    %s71 = sadd.s32 %s70, 1
    %p74 = scmp.eq.s32.totalorder %s15, 1
    %p75 = scmp.ne.s32.totalorder %s70, %s72
    %p76 = scmp.eq.s32.totalorder %s15, 0
    %p77 = por %p75, %p76
    %p78 = scmp.ne.s32.totalorder %s70, %s72
    %p79 = scmp.eq.s32.totalorder %s20, 1
    %p80 = por %p78, %p79
    %p81 = scmp.ne.s32.totalorder %s72, %s73
    %p82 = scmp.eq.s32.totalorder %s20, 0
    %p83 = por %p81, %p82
    %p84 = scmp.ne.s32.totalorder %s72, %s73
    %p85 = scmp.eq.s32.totalorder %s21, 1
    %p86 = por %p84, %p85
    %p88 = scmp.ne.s32.totalorder %s73, %s87
    %p89 = scmp.eq.s32.totalorder %s21, 0
    %p90 = por %p88, %p89
    %s92 = sadd.s32 %s91, 1
    %p95 = scmp.eq.s32.totalorder %s15, 1
    %p96 = scmp.ne.s32.totalorder %s91, %s93
    %p97 = scmp.eq.s32.totalorder %s15, 0
    %p98 = por %p96, %p97
    %p99 = scmp.ne.s32.totalorder %s91, %s93
    %p100 = scmp.eq.s32.totalorder %s20, 1
    %p101 = por %p99, %p100
    %p102 = scmp.ne.s32.totalorder %s93, %s94
    %p103 = scmp.eq.s32.totalorder %s20, 0
    %p104 = por %p102, %p103
    %p105 = scmp.ne.s32.totalorder %s93, %s94
    %p106 = scmp.eq.s32.totalorder %s21, 1
    %p107 = por %p105, %p106
    %p109 = scmp.ne.s32.totalorder %s94, %s108
    %p110 = scmp.eq.s32.totalorder %s21, 0
    %p111 = por %p109, %p110
    %s113 = sadd.s32 %s112, 1
    %p116 = scmp.eq.s32.totalorder %s15, 1
    %p117 = scmp.ne.s32.totalorder %s112, %s114
    %p118 = scmp.eq.s32.totalorder %s15, 0
    %p119 = por %p117, %p118
    %p120 = scmp.ne.s32.totalorder %s112, %s114
    %p121 = scmp.eq.s32.totalorder %s20, 1
    %p122 = por %p120, %p121
    %p123 = scmp.ne.s32.totalorder %s114, %s115
    %p124 = scmp.eq.s32.totalorder %s20, 0
    %p125 = por %p123, %p124
    %p126 = scmp.ne.s32.totalorder %s114, %s115
    %p127 = scmp.eq.s32.totalorder %s21, 1
    %p128 = por %p126, %p127
    %p130 = scmp.ne.s32.totalorder %s115, %s129
    %p131 = scmp.eq.s32.totalorder %s21, 0
    %p132 = por %p130, %p131
    %s134 = sadd.s32 %s133, 1
    %p137 = scmp.eq.s32.totalorder %s15, 1
    %p138 = scmp.ne.s32.totalorder %s133, %s135
    %p139 = scmp.eq.s32.totalorder %s15, 0
    %p140 = por %p138, %p139
    %p141 = scmp.ne.s32.totalorder %s133, %s135
    %p142 = scmp.eq.s32.totalorder %s20, 1
    %p143 = por %p141, %p142
    %p144 = scmp.ne.s32.totalorder %s135, %s136
    %p145 = scmp.eq.s32.totalorder %s20, 0
    %p146 = por %p144, %p145
    %p147 = scmp.ne.s32.totalorder %s135, %s136
    %p148 = scmp.eq.s32.totalorder %s21, 1
    %p149 = por %p147, %p148
    %p151 = scmp.ne.s32.totalorder %s136, %s150
    %p152 = scmp.eq.s32.totalorder %s21, 0
    %p153 = por %p151, %p152
    %s154 = ssub.s32 %s15, %s22
    %p155 = scmp.eq.s32.totalorder %s154, 0
    %s157 = sadd.s32 %s156, 1
    %s158 = scalar_select %p155, %s156, %s157
    %p161 = pneg %p155
    %p162 = scmp.eq.s32.totalorder %s15, 1
    %p163 = por %p161, %p162
    %p164 = scmp.ne.s32.totalorder %s156, %s159
    %p165 = scmp.eq.s32.totalorder %s15, 0
    %p166 = por %p164, %p165
    %p167 = scmp.ne.s32.totalorder %s156, %s159
    %p168 = scmp.eq.s32.totalorder %s20, 1
    %p169 = por %p167, %p168
    %p170 = scmp.ne.s32.totalorder %s159, %s160
    %p171 = scmp.eq.s32.totalorder %s20, 0
    %p172 = por %p170, %p171
    %p173 = scmp.ne.s32.totalorder %s159, %s160
    %p174 = scmp.eq.s32.totalorder %s21, 1
    %p175 = por %p173, %p174
    %p177 = scmp.ne.s32.totalorder %s160, %s176
    %p178 = scmp.eq.s32.totalorder %s21, 0
    %p179 = por %p177, %p178
    %s180 = ssub.s32 %s15, %s22
    %p181 = scmp.eq.s32.totalorder %s180, 0
    %s183 = sadd.s32 %s182, 1
    %s184 = scalar_select %p181, %s182, %s183
    %p187 = pneg %p181
    %p188 = scmp.eq.s32.totalorder %s15, 1
    %p189 = por %p187, %p188
    %p190 = scmp.ne.s32.totalorder %s182, %s185
    %p191 = scmp.eq.s32.totalorder %s15, 0
    %p192 = por %p190, %p191
    %p193 = scmp.ne.s32.totalorder %s182, %s185
    %p194 = scmp.eq.s32.totalorder %s20, 1
    %p195 = por %p193, %p194
    %p196 = scmp.ne.s32.totalorder %s185, %s186
    %p197 = scmp.eq.s32.totalorder %s20, 0
    %p198 = por %p196, %p197
    %p199 = scmp.ne.s32.totalorder %s185, %s186
    %p200 = scmp.eq.s32.totalorder %s21, 1
    %p201 = por %p199, %p200
    %p203 = scmp.ne.s32.totalorder %s186, %s202
    %p204 = scmp.eq.s32.totalorder %s21, 0
    %p205 = por %p203, %p204
    %s206 = ssub.s32 %s15, %s22
    %p207 = scmp.eq.s32.totalorder %s206, 0
    %s209 = sadd.s32 %s208, 1
    %s210 = scalar_select %p207, %s208, %s209
    %p213 = pneg %p207
    %p214 = scmp.eq.s32.totalorder %s15, 1
    %p215 = por %p213, %p214
    %p216 = scmp.ne.s32.totalorder %s208, %s211
    %p217 = scmp.eq.s32.totalorder %s15, 0
    %p218 = por %p216, %p217
    %p219 = scmp.ne.s32.totalorder %s208, %s211
    %p220 = scmp.eq.s32.totalorder %s20, 1
    %p221 = por %p219, %p220
    %p222 = scmp.ne.s32.totalorder %s211, %s212
    %p223 = scmp.eq.s32.totalorder %s20, 0
    %p224 = por %p222, %p223
    %p225 = scmp.ne.s32.totalorder %s211, %s212
    %p226 = scmp.eq.s32.totalorder %s21, 1
    %p227 = por %p225, %p226
    %p229 = scmp.ne.s32.totalorder %s212, %s228
    %p230 = scmp.eq.s32.totalorder %s21, 0
    %p231 = por %p229, %p230
    %p232 = scmp.le.s32.totalorder 1, %s15
    %p233 = scmp.lt.s32.totalorder %s15, 3
    %p234 = pnand %p232, %p233
    %p235 = pneg %p234
    // Predicated region
    $region9: #{encoder_block.4} parent=5 // pred_check
      _
    $region10: #{encoder_block.4} parent=5 // pred_check_branch
      %237 = sbr.rel (%p234) target = $region12
    $region11: #{encoder_block.4} parent=5 // pred_region
      %s238 = ssub.s32 %s15, 1
      // Predicated region
      $region13: #{encoder_block.4} parent=11 // pred_check
        %p239 = pneg %p62
      $region14: #{encoder_block.4} parent=11 // pred_check_branch
        %241 = sbr.rel (%p239) target = $region16
      $region15: #{encoder_block.4} parent=11 // pred_region
        _
      $region16: #{encoder_block.4} parent=11 // pred_fallthru
        _
      // Predicated region
      $region17: #{encoder_block.4} parent=11 // pred_check
        %p242 = pneg %p83
      $region18: #{encoder_block.4} parent=11 // pred_check_branch
        %244 = sbr.rel (%p242) target = $region20
      $region19: #{encoder_block.4} parent=11 // pred_region
        _
      $region20: #{encoder_block.4} parent=11 // pred_fallthru
        _
      // Predicated region
      $region21: #{encoder_block.4} parent=11 // pred_check
        %p245 = pneg %p104
      $region22: #{encoder_block.4} parent=11 // pred_check_branch
        %247 = sbr.rel (%p245) target = $region24
      $region23: #{encoder_block.4} parent=11 // pred_region
        _
      $region24: #{encoder_block.4} parent=11 // pred_fallthru
        _
      // Predicated region
      $region25: #{encoder_block.4} parent=11 // pred_check
        %p248 = pneg %p125
      $region26: #{encoder_block.4} parent=11 // pred_check_branch
        %250 = sbr.rel (%p248) target = $region28
      $region27: #{encoder_block.4} parent=11 // pred_region
        _
      $region28: #{encoder_block.4} parent=11 // pred_fallthru
        _
      // Predicated region
      $region29: #{encoder_block.4} parent=11 // pred_check
        %p251 = pneg %p146
      $region30: #{encoder_block.4} parent=11 // pred_check_branch
        %253 = sbr.rel (%p251) target = $region32
      $region31: #{encoder_block.4} parent=11 // pred_region
        _
      $region32: #{encoder_block.4} parent=11 // pred_fallthru
        _
    $region12: #{encoder_block.4} parent=5 // pred_fallthru
      _
    %p254 = scmp.lt.s32.totalorder %s15, 2
    // Predicated region
    $region33: #{encoder_block.4} parent=5 // pred_check
      %p255 = pneg %p254
    $region34: #{encoder_block.4} parent=5 // pred_check_branch
      %257 = sbr.rel (%p255) target = $region36
    $region35: #{encoder_block.4} parent=5 // pred_region
      // Predicated region
      $region37: #{encoder_block.4} parent=35 // pred_check
        %p258 = pneg %p35
      $region38: #{encoder_block.4} parent=35 // pred_check_branch
        %260 = sbr.rel (%p258) target = $region40
      $region39: #{encoder_block.4} parent=35 // pred_region
        %p261 = scmp.lt.s32.totalorder %s15, 1
        %s262 = scalar_select %p261, %s15, 1
        %s263 = smul.addr %s262, 2
        %s264 = smul.addr %s263, 8
        %s265 = scalar_lea.vmem %s0, %s264
      $region40: #{encoder_block.4} parent=35 // pred_fallthru
        _
    $region36: #{encoder_block.4} parent=5 // pred_fallthru
      _
    %p266 = scmp.le.s32.totalorder 1, %s15
    %p267 = scmp.lt.s32.totalorder %s15, 3
    %p268 = pnand %p266, %p267
    %p269 = pneg %p268
    // Predicated region
    $region41: #{encoder_block.4} parent=5 // pred_check
      _
    $region42: #{encoder_block.4} parent=5 // pred_check_branch
      %271 = sbr.rel (%p268) target = $region44
    $region43: #{encoder_block.4} parent=5 // pred_region
      %s272 = ssub.s32 %s15, 1
      %p273 = scmp.lt.s32.totalorder %s20, 1
      %s274 = scalar_select %p273, %s20, 1
      %s275 = smul.addr %s274, 2
      %s276 = smul.addr %s275, 8
      %s277 = scalar_lea.vmem %s0, %s276
      %p278 = pneg %p41
      %p279 = pneg %p38
      %p280 = pneg %p62
      %p281 = pneg %p59
      %p282 = pneg %p83
      %p283 = pneg %p80
      %p284 = pneg %p104
      %p285 = pneg %p101
      %p286 = pneg %p125
      %p287 = pneg %p122
      %p288 = pneg %p146
      %p289 = pneg %p143
      %p290 = pneg %p172
      %p291 = pneg %p169
      %p292 = scmp.lt.s32.totalorder %s20, 1
      %s293 = scalar_select %p292, %s20, 1
      %s294 = smul.addr %s293, 2
      %s295 = smul.addr %s294, 8
      %s296 = scalar_lea.vmem %s6, %s295
      %p297 = pneg %p198
      %p298 = pneg %p195
      %p299 = scmp.lt.s32.totalorder %s20, 1
      %s300 = scalar_select %p299, %s20, 1
      %s301 = smul.addr %s300, 8
      %s302 = scalar_lea.vmem %s7, %s301
      %p303 = pneg %p224
      %p304 = pneg %p221
      %p305 = scmp.lt.s32.totalorder %s20, 1
      %s306 = scalar_select %p305, %s20, 1
      %s307 = smul.addr %s306, 8
      %s308 = scalar_lea.vmem %s8, %s307
      %p309 = scmp.lt.s32.totalorder %s20, 1
      %s310 = scalar_select %p309, %s20, 1
      %s311 = smul.addr %s310, 2
      %s312 = smul.addr %s311, 8
      %s313 = scalar_lea.vmem %s0, %s312
      %p314 = scmp.lt.s32.totalorder %s20, 1
      %s315 = scalar_select %p314, %s20, 1
      %s316 = smul.addr %s315, 2
      %s317 = smul.addr %s316, 8
      %s318 = scalar_lea.vmem %s6, %s317
      %p319 = scmp.lt.s32.totalorder %s20, 1
      %s320 = scalar_select %p319, %s20, 1
      %s321 = smul.addr %s320, 8
      %s322 = scalar_lea.vmem %s7, %s321
      %p323 = scmp.lt.s32.totalorder %s20, 1
      %s324 = scalar_select %p323, %s20, 1
      %s325 = smul.addr %s324, 8
      %s326 = scalar_lea.vmem %s8, %s325
      %v328 = vld [vmem:[%s313] sm:$0xff]
      %v329 = vld [vmem:[%s313 + $0x8] sm:$0xff]
      %v330 = vld [vmem:[%s1] sm:$0xff]
      %332 = vset.pattern.permute.xlu0 0
      %333 = vperm.xlu0 %332, %v330
      %v334 = vpop.permute.xlu0 %333
      %v336 = vmul.f32 %v328, %v334
      %v337 = vmul.f32 %v329, %v334
      %v338 = vld [vmem:[%s2] sm:$0xff]
      %340 = vset.pattern.permute.xlu0 0
      %341 = vperm.xlu0 %340, %v338
      %v342 = vpop.permute.xlu0 %341
      %v344 = vadd.f32 %v336, %v342
      %v345 = vadd.f32 %v337, %v342
      %v346 = vmax.f32 %v344, 0.0
      %v347 = vmax.f32 %v345, 0.0
      %348 = vrot.lane.b32.xlu0 %v346, 17
      %v349 = vpop.permute.xlu0 %348
      %350 = vrot.lane.b32.xlu0 %v347, 17
      %v351 = vpop.permute.xlu0 %350
      %v352 = vlaneseq
      %v353 = vand.u32 %v352, 127
      %vm354 = vcmp.lt.s32.totalorder %v353, 17
      %v355 = vsel %vm354, %v349, %v351
      %v356 = vsel %vm354, %v351, %v349
      %v357 = vld [vmem:[%s5] ss:$8 sm:$0x3]
      %v359 = vlaneseq
      %v360 = vshrl.u32 %v359, 7
      %v361 = vsub.s32 0, %v360
      %v362 = vrot.slane %v357, %v361
      %v363 = vlaneseq
      %v364 = vshrl.u32 %v363, 7
      %v365 = vsub.s32 1, %v364
      %v366 = vrot.slane %v357, %v365
      %v369 = vmul.f32 %v356, %v362
      %v370 = vmul.f32 %v355, %v366
      %371 = vst [vmem:[#allocation2] sm:$0xff] %v369
      %372 = vst [vmem:[#allocation2 + $0x8] sm:$0xff] %v370
      %373 = vrot.lane.b32.xlu0 %v346, 16
      %v374 = vpop.permute.xlu0 %373
      %375 = vrot.lane.b32.xlu0 %v347, 16
      %v376 = vpop.permute.xlu0 %375
      %vm377 = vcmp.lt.s32.totalorder %v353, 16
      %v378 = vsel %vm377, %v374, %v376
      %v379 = vsel %vm377, %v376, %v374
      %s380 = scalar_lea.vmem %s5, 1
      %v381 = vld [vmem:[%s380] ss:$8 sm:$0x3]
      %v383 = vlaneseq
      %v384 = vshrl.u32 %v383, 7
      %v385 = vsub.s32 0, %v384
      %v386 = vrot.slane %v381, %v385
      %v387 = vlaneseq
      %v388 = vshrl.u32 %v387, 7
      %v389 = vsub.s32 1, %v388
      %v390 = vrot.slane %v381, %v389
      %v393 = vmul.f32 %v379, %v386
      %v394 = vmul.f32 %v378, %v390
      %395 = vst [vmem:[#allocation2 + $0x10] sm:$0xff] %v393
      %396 = vst [vmem:[#allocation2 + $0x18] sm:$0xff] %v394
      %397 = vrot.lane.b32.xlu0 %v346, 15
      %v398 = vpop.permute.xlu0 %397
      %399 = vrot.lane.b32.xlu0 %v347, 15
      %v400 = vpop.permute.xlu0 %399
      %vm401 = vcmp.lt.s32.totalorder %v353, 15
      %v402 = vsel %vm401, %v398, %v400
      %v403 = vsel %vm401, %v400, %v398
      %s404 = scalar_lea.vmem %s5, 2
      %v405 = vld [vmem:[%s404] ss:$8 sm:$0x3]
      %v407 = vlaneseq
      %v408 = vshrl.u32 %v407, 7
      %v409 = vsub.s32 0, %v408
      %v410 = vrot.slane %v405, %v409
      %v411 = vlaneseq
      %v412 = vshrl.u32 %v411, 7
      %v413 = vsub.s32 1, %v412
      %v414 = vrot.slane %v405, %v413
      %v417 = vmul.f32 %v403, %v410
      %v418 = vmul.f32 %v402, %v414
      %419 = vst [vmem:[#allocation2 + $0x20] sm:$0xff] %v417
      %420 = vst [vmem:[#allocation2 + $0x28] sm:$0xff] %v418
      %421 = vrot.lane.b32.xlu0 %v346, 1
      %v422 = vpop.permute.xlu0 %421
      %423 = vrot.lane.b32.xlu0 %v347, 1
      %v424 = vpop.permute.xlu0 %423
      %vm425 = vcmp.lt.s32.totalorder %v353, 1
      %v426 = vsel %vm425, %v422, %v424
      %v427 = vsel %vm425, %v424, %v422
      %s428 = scalar_lea.vmem %s5, 3
      %v429 = vld [vmem:[%s428] ss:$8 sm:$0x3]
      %v431 = vlaneseq
      %v432 = vshrl.u32 %v431, 7
      %v433 = vsub.s32 0, %v432
      %v434 = vrot.slane %v429, %v433
      %v435 = vlaneseq
      %v436 = vshrl.u32 %v435, 7
      %v437 = vsub.s32 1, %v436
      %v438 = vrot.slane %v429, %v437
      %v441 = vmul.f32 %v427, %v434
      %v442 = vmul.f32 %v426, %v438
      %443 = vst [vmem:[#allocation2 + $0x30] sm:$0xff] %v441
      %444 = vst [vmem:[#allocation2 + $0x38] sm:$0xff] %v442
      %445 = vst [vmem:[#allocation2 + $0x40] sm:$0xff] %v346
      %446 = vst [vmem:[#allocation2 + $0x48] sm:$0xff] %v347
      %447 = vrot.lane.b32.xlu0 %v346, 127
      %v448 = vpop.permute.xlu0 %447
      %449 = vrot.lane.b32.xlu0 %v347, 127
      %v450 = vpop.permute.xlu0 %449
      %vm451 = vcmp.lt.s32.totalorder %v353, 127
      %v452 = vsel %vm451, %v448, %v450
      %v453 = vsel %vm451, %v450, %v448
      %s454 = scalar_lea.vmem %s5, 5
      %v455 = vld [vmem:[%s454] ss:$8 sm:$0x3]
      %v457 = vlaneseq
      %v458 = vshrl.u32 %v457, 7
      %v459 = vsub.s32 0, %v458
      %v460 = vrot.slane %v455, %v459
      %v461 = vlaneseq
      %v462 = vshrl.u32 %v461, 7
      %v463 = vsub.s32 1, %v462
      %v464 = vrot.slane %v455, %v463
      %v467 = vmul.f32 %v452, %v460
      %v468 = vmul.f32 %v453, %v464
      %469 = vst [vmem:[#allocation2 + $0x50] sm:$0xff] %v467
      %470 = vst [vmem:[#allocation2 + $0x58] sm:$0xff] %v468
      %471 = vrot.lane.b32.xlu0 %v346, 113
      %v472 = vpop.permute.xlu0 %471
      %473 = vrot.lane.b32.xlu0 %v347, 113
      %v474 = vpop.permute.xlu0 %473
      %vm475 = vcmp.lt.s32.totalorder %v353, 113
      %v476 = vsel %vm475, %v472, %v474
      %v477 = vsel %vm475, %v474, %v472
      %s478 = scalar_lea.vmem %s5, 6
      %v479 = vld [vmem:[%s478] ss:$8 sm:$0x3]
      %v481 = vlaneseq
      %v482 = vshrl.u32 %v481, 7
      %v483 = vsub.s32 0, %v482
      %v484 = vrot.slane %v479, %v483
      %v485 = vlaneseq
      %v486 = vshrl.u32 %v485, 7
      %v487 = vsub.s32 1, %v486
      %v488 = vrot.slane %v479, %v487
      %v491 = vmul.f32 %v476, %v484
      %v492 = vmul.f32 %v477, %v488
      %493 = vst [vmem:[#allocation2 + $0x60] sm:$0xff] %v491
      %494 = vst [vmem:[#allocation2 + $0x68] sm:$0xff] %v492
      %495 = vrot.lane.b32.xlu0 %v346, 112
      %v496 = vpop.permute.xlu0 %495
      %497 = vrot.lane.b32.xlu0 %v347, 112
      %v498 = vpop.permute.xlu0 %497
      %vm499 = vcmp.lt.s32.totalorder %v353, 112
      %v500 = vsel %vm499, %v496, %v498
      %v501 = vsel %vm499, %v498, %v496
      %s502 = scalar_lea.vmem %s5, 7
      %v503 = vld [vmem:[%s502] ss:$8 sm:$0x3]
      %v505 = vlaneseq
      %v506 = vshrl.u32 %v505, 7
      %v507 = vsub.s32 0, %v506
      %v508 = vrot.slane %v503, %v507
      %v509 = vlaneseq
      %v510 = vshrl.u32 %v509, 7
      %v511 = vsub.s32 1, %v510
      %v512 = vrot.slane %v503, %v511
      %v515 = vmul.f32 %v500, %v508
      %v516 = vmul.f32 %v501, %v512
      %517 = vst [vmem:[#allocation2 + $0x70] sm:$0xff] %v515
      %518 = vst [vmem:[#allocation2 + $0x78] sm:$0xff] %v516
      %519 = vrot.lane.b32.xlu0 %v346, 111
      %v520 = vpop.permute.xlu0 %519
      %521 = vrot.lane.b32.xlu0 %v347, 111
      %v522 = vpop.permute.xlu0 %521
      %vm523 = vcmp.lt.s32.totalorder %v353, 111
      %v524 = vsel %vm523, %v520, %v522
      %v525 = vsel %vm523, %v522, %v520
      %s526 = scalar_lea.vmem %s5, 16
      %v527 = vld [vmem:[%s526] ss:$8 sm:$0x3]
      %v529 = vlaneseq
      %v530 = vshrl.u32 %v529, 7
      %v531 = vsub.s32 0, %v530
      %v532 = vrot.slane %v527, %v531
      %v533 = vlaneseq
      %v534 = vshrl.u32 %v533, 7
      %v535 = vsub.s32 1, %v534
      %v536 = vrot.slane %v527, %v535
      %v539 = vmul.f32 %v524, %v532
      %v540 = vmul.f32 %v525, %v536
      %541 = vst [vmem:[#allocation2 + $0x80] sm:$0xff] %v539
      %542 = vst [vmem:[#allocation2 + $0x88] sm:$0xff] %v540
      %v543 = vld [vmem:[#allocation2] sm:$0xff]
      %v544 = vld [vmem:[#allocation2 + $0x8] sm:$0xff]
      %v545 = vld [vmem:[#allocation2 + $0x10] sm:$0xff]
      %v546 = vld [vmem:[#allocation2 + $0x18] sm:$0xff]
      %v547 = vld [vmem:[#allocation2 + $0x20] sm:$0xff]
      %v548 = vld [vmem:[#allocation2 + $0x28] sm:$0xff]
      %v549 = vld [vmem:[#allocation2 + $0x30] sm:$0xff]
      %v550 = vld [vmem:[#allocation2 + $0x38] sm:$0xff]
      %v551 = vld [vmem:[#allocation2 + $0x40] sm:$0xff]
      %v552 = vld [vmem:[#allocation2 + $0x48] sm:$0xff]
      %v553 = vld [vmem:[#allocation2 + $0x50] sm:$0xff]
      %v554 = vld [vmem:[#allocation2 + $0x58] sm:$0xff]
      %v555 = vld [vmem:[#allocation2 + $0x60] sm:$0xff]
      %v556 = vld [vmem:[#allocation2 + $0x68] sm:$0xff]
      %v557 = vld [vmem:[#allocation2 + $0x70] sm:$0xff]
      %v558 = vld [vmem:[#allocation2 + $0x78] sm:$0xff]
      %v559 = vld [vmem:[#allocation2 + $0x80] sm:$0xff]
      %v560 = vld [vmem:[#allocation2 + $0x88] sm:$0xff]
      %v561 = vpack.c.bf16 %v545, %v543
      %v562 = vpack.c.bf16 %v546, %v544
      %v563 = vpack.c.bf16 %v549, %v547
      %v564 = vpack.c.bf16 %v550, %v548
      %v565 = vpack.c.bf16 %v553, %v551
      %v566 = vpack.c.bf16 %v554, %v552
      %v567 = vpack.c.bf16 %v557, %v555
      %v568 = vpack.c.bf16 %v558, %v556
      %v569 = vpack.c.bf16 %v559, %v559
      %v570 = vpack.c.bf16 %v560, %v560
      %v571 = vld [vmem:[%s3] sm:$0xf]
      %v572 = vld [vmem:[%s4] sm:$0xff]
      %574 = vset.pattern.permute.xlu0 0
      %575 = vperm.xlu0 %574, %v572
      %v576 = vpop.permute.xlu0 %575
      %vm578 = vcmask 588800
      %v580 = vsel %vm578, %v571, 0
      %vm582 = vcmask 1043456
      %v584 = vsel %vm582, %v569, 0
      %v587 = vsel %vm582, %v570, 0
      %589 = vmatprep.subr.bf16.mxu0 %v562
      %590 = vmatpush1.bf16.msra.mxu0 %v561
      %591 = vmatprep.subr.bf16.mxu0 %v564
      %592 = vmatpush1.bf16.msra.mxu0 %v563
      %593 = vmatprep.subr.bf16.mxu0 %v566
      %594 = vmatpush1.bf16.msra.mxu0 %v565
      %595 = vmatprep.subr.bf16.mxu0 %v568
      %596 = vmatpush1.bf16.msra.mxu0 %v567
      %597 = vmatprep.subr.bf16.mxu0 %v587
      %598 = vmatpush1.bf16.msra.mxu0 %v584
      %599 = vmatprep.subr.bf16.mxu0 0
      %600 = vmatpush1.bf16.msra.mxu0 0
      %601 = vmatprep.subr.bf16.mxu0 0
      %602 = vmatpush1.bf16.msra.mxu0 0
      %603 = vmatprep.subr.bf16.mxu0 0
      %604 = vmatpush1.bf16.msra.mxu0 0
      %605 = vmatprep.subr.bf16.mxu0 0
      %606 = vmatpush1.bf16.msra.mxu0 0
      %607 = vmatprep.subr.bf16.mxu0 0
      %608 = vmatpush1.bf16.msra.mxu0 0
      %609 = vmatprep.subr.bf16.mxu0 0
      %610 = vmatpush1.bf16.msra.mxu0 0
      %611 = vmatprep.subr.bf16.mxu0 0
      %612 = vmatpush1.bf16.msra.mxu0 0
      %613 = vmatprep.subr.bf16.mxu0 0
      %614 = vmatpush1.bf16.msra.mxu0 0
      %615 = vmatprep.subr.bf16.mxu0 0
      %616 = vmatpush1.bf16.msra.mxu0 0
      %617 = vmatprep.subr.bf16.mxu0 0
      %618 = vmatpush1.bf16.msra.mxu0 0
      %619 = vmatprep.subr.bf16.mxu0 0
      %620 = vmatpush1.bf16.msra.mxu0 0
      %621 = vmatprep.mubr.bf16.mxu0 0
      %622 = vmatmul.mubr.bf16.gmra.mrb[0].mxu0 %v580
      %v623 = vpop.f32.mrb[0].mxu0
      %v624 = vadd.f32 %v576, %v623
      %v625 = vpop.f32.mrb[0].mxu0
      %v626 = vadd.f32 %v576, %v625
      %v627 = vpop.f32.mrb[0].mxu0
      %v628 = vpop.f32.mrb[0].mxu0
      %629 = vdwg.mxu0
      %630 = vst [vmem:[%s318] sm:$0xff] %v624
      %631 = vst [vmem:[%s318 + $0x8] sm:$0xff] %v626
      %v632 = vadd.f32 %v624, %v626
      %633 = vadd.xlane.f32.xlu0 %v632
      %v634 = vpop.xlane.xlu0 %633
      %vm635 = vcmask 7168
      %636 = vst.msk [vmem:[%s322] sm:$0xff] %vm635, %v634
      %v637 = vmul.f32 %v624, %v624
      %v638 = vmul.f32 %v626, %v626
      %v639 = vadd.f32 %v637, %v638
      %640 = vadd.xlane.f32.xlu0 %v639
      %v641 = vpop.xlane.xlu0 %640
      %642 = vst.msk [vmem:[%s326] sm:$0xff] %vm635, %v641
      %p643 = scmp.lt.s32.totalorder %s20, 1
      %s644 = scalar_select %p643, %s20, 1
      %s645 = smul.addr %s644, 2
      %s646 = smul.addr %s645, 8
      %s647 = scalar_lea.vmem %s6, %s646
      %p648 = scmp.lt.s32.totalorder %s20, 1
      %s649 = scalar_select %p648, %s20, 1
      %s650 = smul.addr %s649, 8
      %s651 = scalar_lea.vmem %s7, %s650
      %p652 = scmp.lt.s32.totalorder %s20, 1
      %s653 = scalar_select %p652, %s20, 1
      %s654 = smul.addr %s653, 8
      %s655 = scalar_lea.vmem %s8, %s654
      // Predicated region
      $region45: #{encoder_block.4} parent=43 // pred_check
        %p656 = pneg %p169
      $region46: #{encoder_block.4} parent=43 // pred_check_branch
        %658 = sbr.rel (%p656) target = $region48
      $region47: #{encoder_block.4} parent=43 // pred_region
        _
      $region48: #{encoder_block.4} parent=43 // pred_fallthru
        _
      // Predicated region
      $region49: #{encoder_block.4} parent=43 // pred_check
        %p659 = pneg %p195
      $region50: #{encoder_block.4} parent=43 // pred_check_branch
        %661 = sbr.rel (%p659) target = $region52
      $region51: #{encoder_block.4} parent=43 // pred_region
        _
      $region52: #{encoder_block.4} parent=43 // pred_fallthru
        _
      // Predicated region
      $region53: #{encoder_block.4} parent=43 // pred_check
        %p662 = pneg %p221
      $region54: #{encoder_block.4} parent=43 // pred_check_branch
        %664 = sbr.rel (%p662) target = $region56
      $region55: #{encoder_block.4} parent=43 // pred_region
        _
      $region56: #{encoder_block.4} parent=43 // pred_fallthru
        _
    $region44: #{encoder_block.4} parent=5 // pred_fallthru
      _
    %p665 = scmp.le.s32.totalorder 2, %s15
    // Predicated region
    $region57: #{encoder_block.4} parent=5 // pred_check
      %p666 = pneg %p665
    $region58: #{encoder_block.4} parent=5 // pred_check_branch
      %668 = sbr.rel (%p666) target = $region60
    $region59: #{encoder_block.4} parent=5 // pred_region
      %s669 = ssub.s32 %s15, 2
      // Predicated region
      $region61: #{encoder_block.4} parent=59 // pred_check
        %p670 = pneg %p175
      $region62: #{encoder_block.4} parent=59 // pred_check_branch
        %672 = sbr.rel (%p670) target = $region64
      $region63: #{encoder_block.4} parent=59 // pred_region
        %p673 = scmp.lt.s32.totalorder %s21, 1
        %s674 = scalar_select %p673, %s21, 1
        %s675 = smul.addr %s674, 2
        %s676 = smul.addr %s675, 8
        %s677 = scalar_lea.vmem %s6, %s676
      $region64: #{encoder_block.4} parent=59 // pred_fallthru
        _
      // Predicated region
      $region65: #{encoder_block.4} parent=59 // pred_check
        %p678 = pneg %p201
      $region66: #{encoder_block.4} parent=59 // pred_check_branch
        %680 = sbr.rel (%p678) target = $region68
      $region67: #{encoder_block.4} parent=59 // pred_region
        %p681 = scmp.lt.s32.totalorder %s21, 1
        %s682 = scalar_select %p681, %s21, 1
        %s683 = smul.addr %s682, 8
        %s684 = scalar_lea.vmem %s7, %s683
      $region68: #{encoder_block.4} parent=59 // pred_fallthru
        _
      // Predicated region
      $region69: #{encoder_block.4} parent=59 // pred_check
        %p685 = pneg %p227
      $region70: #{encoder_block.4} parent=59 // pred_check_branch
        %687 = sbr.rel (%p685) target = $region72
      $region71: #{encoder_block.4} parent=59 // pred_region
        %p688 = scmp.lt.s32.totalorder %s21, 1
        %s689 = scalar_select %p688, %s21, 1
        %s690 = smul.addr %s689, 8
        %s691 = scalar_lea.vmem %s8, %s690
      $region72: #{encoder_block.4} parent=59 // pred_fallthru
        _
    $region60: #{encoder_block.4} parent=5 // pred_fallthru
      _
  $region6: #{encoder_block.4} parent=0 // loop_footer
    %s19 = sadd.s32 1, %s15
  $region7: #{encoder_block.4} parent=0 // loop_footer_branch
    %14 = sbr.rel target = $region3
  $region8: #{encoder_block.4} parent=0 // loop_exit
    _

</llo_original>
